<compile_context>
chip_gen: v7x
topology: tpu7x:2x2x1
jax: 0.10.0
libtpu: 0.0.40
codegen_flags: <defaults>
</compile_context>

<pallas_src>
import jax
import jax.numpy as jnp
from jax.experimental import pallas as pl
from jax.experimental.pallas import tpu as pltpu

R_MAX = 32
S_MAX = 2
NUM_RES_BINS = 2 * R_MAX + 2          # 66
NUM_CHAIN_BINS = 2 * S_MAX + 2        # 6
ENT_CHANNEL = 2 * NUM_RES_BINS        # 132 (same_entity flag channel)
CHAIN_OFFSET = 2 * NUM_RES_BINS + 1   # 133
OUT_DIM = 4 * R_MAX + 2 * S_MAX + 7   # 139
NUM_IDS = 5                           # asym, residue, token, sym, entity


def _relpos_kernel(col_ref, row_ref, out_ref):
    # col_ref: (1, TQ, 5) int32 ids for the first pair index of this tile.
    # row_ref: (1, 5, TK) int32 ids for the second pair index of this tile.
    # out_ref: (1, TQ, TK, OUT_DIM) in the caller-requested dtype.
    cols = col_ref[0]                  # (TQ, 5)
    rows = row_ref[0]                  # (5, TK)

    asym_c, res_c, tok_c, sym_c, ent_c = (cols[:, i:i + 1] for i in range(NUM_IDS))
    asym_r, res_r, tok_r, sym_r, ent_r = (rows[i:i + 1, :] for i in range(NUM_IDS))

    same_chain = asym_c == asym_r                      # (TQ, TK) bool
    same_res = (res_c == res_r) & same_chain
    same_entity = ent_c == ent_r

    # Bucket ids, each offset into its disjoint channel range of [0, 139):
    #   d_res   in [0, 66)     -> channels [0, 66)
    #   d_tok   in [66, 132)   -> channels [66, 132)
    #   d_ent   in {-1, 132}   -> channel 132 (same_entity; -1 never matches)
    #   d_chain in [133, 139)  -> channels [133, 139)
    d_res = jnp.where(
        same_chain,
        jnp.clip(res_c - res_r + R_MAX, 0, 2 * R_MAX),
        2 * R_MAX + 1,
    )
    d_tok = jnp.where(
        same_res,
        jnp.clip(tok_c - tok_r + R_MAX, 0, 2 * R_MAX),
        2 * R_MAX + 1,
    ) + NUM_RES_BINS
    d_chain = jnp.where(
        jnp.logical_not(same_chain),
        jnp.clip(sym_c - sym_r + S_MAX, 0, 2 * S_MAX),
        2 * S_MAX + 1,
    ) + CHAIN_OFFSET
    d_ent = jnp.where(same_entity, ENT_CHANNEL, -1)

    # Lane-constant channel iota (1, 1, 139): the select conditions below are
    # lane-constant, so only the 3 selects + final compare (+ cast) run at
    # full (TQ, TK, 139) rank.
    classes = jax.lax.broadcasted_iota(jnp.int32, (1, 1, OUT_DIM), 2)

    picked = jnp.where(
        classes < NUM_RES_BINS, d_res[:, :, None],
        jnp.where(
            classes < ENT_CHANNEL, d_tok[:, :, None],
            jnp.where(classes == ENT_CHANNEL, d_ent[:, :, None],
                      d_chain[:, :, None]),
        ),
    )

    # Single lane-dense full-block store, directly in the output dtype.
    out_ref[0] = (picked == classes).astype(out_ref.dtype)


def _vmem_capacity_bytes():
    try:
        return int(pltpu.get_tpu_info().vmem_capacity_bytes)
    except Exception:
        return 64 * 1024 * 1024   # conservative fallback (v7x-sized budget)


def relative_position_encoding(features, dtype=jnp.bfloat16, *, tq=None, tk=None):
    """AF3 relative position encoding. Returns [B, N, N, 139] in `dtype`.

    Default output dtype is bf16: values are exactly 0/1, so the narrow cast
    is lossless and halves HBM write traffic (the dominant stream).
    """
    names = ("asym_id", "residue_index", "token_index", "sym_id", "entity_id")
    ids = [features[k].astype(jnp.int32) for k in names]
    B, N = ids[0].shape
    itemsize = jnp.dtype(dtype).itemsize

    # Per-generation defaults: big-VMEM chips (v5e/v6e: 128 MiB) take larger
    # tiles; small-VMEM chips (v7x: 64 MiB) keep the out block <= ~8.5 MiB.
    big_vmem = _vmem_capacity_bytes() > 96 * 1024 * 1024
    if tq is None:
        tq = (256 if itemsize <= 2 else 128) if big_vmem else (128 if itemsize <= 2 else 64)
    if tk is None:
        tk = 128
    vmem_limit = (100 if big_vmem else 48) * 1024 * 1024

    # Tile-size legality (Mosaic (8, 128) rule):
    #   tq is a sublane extent on the column blocks -> multiple of 8 or N.
    #   tk is a lane extent on the row blocks       -> multiple of 128 or N.
    tq = min(tq, N)
    tk = min(tk, N)
    if tq != N and tq % 8 != 0:
        tq = N
    if tk != N and tk % 128 != 0:
        tk = N

    grid = (B, pl.cdiv(N, tq), pl.cdiv(N, tk))

    # Pack the five id vectors into one column view and one row view so each
    # grid step issues 2 input DMAs instead of 10.
    ids_col = jnp.stack(ids, axis=-1)   # (B, N, 5)
    ids_row = jnp.stack(ids, axis=1)    # (B, 5, N)

    col_spec = pl.BlockSpec((1, tq, NUM_IDS), lambda b, i, j: (b, i, 0))
    row_spec = pl.BlockSpec((1, NUM_IDS, tk), lambda b, i, j: (b, 0, j))
    out_spec = pl.BlockSpec((1, tq, tk, OUT_DIM), lambda b, i, j: (b, i, j, 0))

    cost = pl.CostEstimate(
        flops=8 * B * N * N * OUT_DIM,
        transcendentals=0,
        bytes_accessed=B * N * N * OUT_DIM * itemsize + 2 * B * N * NUM_IDS * 4,
    )

    return pl.pallas_call(
        _relpos_kernel,
        out_shape=jax.ShapeDtypeStruct((B, N, N, OUT_DIM), dtype),
        grid=grid,
        in_specs=[col_spec, row_spec],
        out_specs=out_spec,
        cost_estimate=cost,
        compiler_params=pltpu.CompilerParams(
            dimension_semantics=("parallel", "parallel", "parallel"),
            vmem_limit_bytes=vmem_limit,
        ),
    )(ids_col, ids_row)


def _reference(features, dtype=jnp.float32):
    # Pure-JAX reference mirroring the PyTorch module semantics.
    asym = features["asym_id"].astype(jnp.int32)
    sym = features["sym_id"].astype(jnp.int32)
    ent = features["entity_id"].astype(jnp.int32)
    tok = features["token_index"].astype(jnp.int32)
    res = features["residue_index"].astype(jnp.int32)

    def pair_same(x):
        return x[..., :, None] == x[..., None, :]

    def pair_diff(x):
        return x[..., :, None] - x[..., None, :]

    b_same_chain = pair_same(asym)
    b_same_res = pair_same(res) & b_same_chain
    b_same_entity = pair_same(ent)

    d_res = jnp.where(
        b_same_chain, jnp.clip(pair_diff(res) + R_MAX, 0, 2 * R_MAX), 2 * R_MAX + 1)
    rel_pos = jax.nn.one_hot(d_res, NUM_RES_BINS, dtype=dtype)
    d_tok = jnp.where(
        b_same_res, jnp.clip(pair_diff(tok) + R_MAX, 0, 2 * R_MAX), 2 * R_MAX + 1)
    rel_tok = jax.nn.one_hot(d_tok, NUM_RES_BINS, dtype=dtype)
    d_chain = jnp.where(
        ~b_same_chain, jnp.clip(pair_diff(sym) + S_MAX, 0, 2 * S_MAX), 2 * S_MAX + 1)
    rel_chain = jax.nn.one_hot(d_chain, NUM_CHAIN_BINS, dtype=dtype)
    return jnp.concatenate(
        [rel_pos, rel_tok, b_same_entity.astype(dtype)[..., None], rel_chain], axis=-1)


def _make_features(key, B, N):
    k1, k2, k3 = jax.random.split(key, 3)
    asym_id = jax.random.randint(k1, (B, N), 0, 3, dtype=jnp.int32)
    sym_id = jax.random.randint(k2, (B, N), 0, 4, dtype=jnp.int32)
    entity_id = asym_id % 2
    residue_index = jnp.tile(jnp.arange(N, dtype=jnp.int32), (B, 1))
    token_index = residue_index + jax.random.randint(k3, (B, N), 0, 2, dtype=jnp.int32)
    return {
        "asym_id": asym_id,
        "sym_id": sym_id,
        "entity_id": entity_id,
        "token_index": token_index,
        "residue_index": residue_index,
    }


if __name__ == "__main__":
    key = jax.random.PRNGKey(0)
    k_small, k_edge = jax.random.split(key)

    # --- Small shape: default bf16 output and an explicit-tile f32 run. ---
    B, N = 2, 16
    feats = _make_features(k_small, B, N)
    ref = _reference(feats)

    out_bf16 = jax.block_until_ready(relative_position_encoding(feats))  # default bf16
    assert out_bf16.shape == (B, N, N, OUT_DIM), out_bf16.shape
    assert out_bf16.dtype == jnp.bfloat16
    assert jnp.allclose(out_bf16.astype(jnp.float32), ref), "bf16 mismatch vs reference"

    out_f32 = jax.block_until_ready(
        relative_position_encoding(feats, jnp.float32, tq=8, tk=16))
    assert out_f32.dtype == jnp.float32
    assert jnp.allclose(out_f32, ref), "f32 mismatch vs reference"

    # --- Edge case: N not a multiple of the 128-lane tile (partial blocks
    #     read OOB-padded ids; output writeback must still be clipped). ---
    B2, N2 = 1, 200
    feats2 = _make_features(k_edge, B2, N2)
    ref2 = _reference(feats2)
    out2 = jax.block_until_ready(relative_position_encoding(feats2))
    assert out2.shape == (B2, N2, N2, OUT_DIM)
    assert jnp.allclose(out2.astype(jnp.float32), ref2), "partial-tile mismatch vs reference"

    print("KERNEL_OK")
</pallas_src>

<mosaic_0001>
module attributes {stable_mosaic.version = 11 : i64} {
  func.func @_relpos_kernel(%arg0: i32, %arg1: i32, %arg2: i32, %arg3: memref<1x16x5xi32, #tpu.memory_space<vmem>>, %arg4: memref<1x5x16xi32, #tpu.memory_space<vmem>>, %arg5: memref<1x16x16x139xbf16, #tpu.memory_space<vmem>>) attributes {dimension_semantics = [#tpu.dimension_semantics<parallel>, #tpu.dimension_semantics<parallel>, #tpu.dimension_semantics<parallel>], iteration_bounds = array<i64: 2, 1, 1>, scalar_prefetch = 0 : i64, scratch_operands = 0 : i64, tpu.core_type = #tpu.core_type<tc>, window_params = [{transform_indices = @transform_0, window_bounds = array<i64: 1, 16, 5>}, {transform_indices = @transform_1, window_bounds = array<i64: 1, 5, 16>}, {transform_indices = @transform_2, window_bounds = array<i64: 1, 16, 16, 139>}]} {
    %c0 = arith.constant 0 : index
    %c0_0 = arith.constant 0 : index
    %c0_1 = arith.constant 0 : index
    %0 = vector.load %arg3[%c0, %c0_0, %c0_1] : memref<1x16x5xi32, #tpu.memory_space<vmem>>, vector<1x16x5xi32>
    %1 = vector.shape_cast %0 : vector<1x16x5xi32> to vector<16x5xi32>
    %c0_2 = arith.constant 0 : index
    %c0_3 = arith.constant 0 : index
    %c0_4 = arith.constant 0 : index
    %2 = vector.load %arg4[%c0_2, %c0_3, %c0_4] : memref<1x5x16xi32, #tpu.memory_space<vmem>>, vector<1x5x16xi32>
    %3 = vector.shape_cast %2 : vector<1x5x16xi32> to vector<5x16xi32>
    %4 = vector.extract_strided_slice %1 {offsets = [0, 0], sizes = [16, 1], strides = [1, 1]} : vector<16x5xi32> to vector<16x1xi32>
    %5 = vector.extract_strided_slice %1 {offsets = [0, 1], sizes = [16, 1], strides = [1, 1]} : vector<16x5xi32> to vector<16x1xi32>
    %6 = vector.extract_strided_slice %1 {offsets = [0, 2], sizes = [16, 1], strides = [1, 1]} : vector<16x5xi32> to vector<16x1xi32>
    %7 = vector.extract_strided_slice %1 {offsets = [0, 3], sizes = [16, 1], strides = [1, 1]} : vector<16x5xi32> to vector<16x1xi32>
    %8 = vector.extract_strided_slice %1 {offsets = [0, 4], sizes = [16, 1], strides = [1, 1]} : vector<16x5xi32> to vector<16x1xi32>
    %9 = vector.extract_strided_slice %3 {offsets = [0, 0], sizes = [1, 16], strides = [1, 1]} : vector<5x16xi32> to vector<1x16xi32>
    %10 = vector.extract_strided_slice %3 {offsets = [1, 0], sizes = [1, 16], strides = [1, 1]} : vector<5x16xi32> to vector<1x16xi32>
    %11 = vector.extract_strided_slice %3 {offsets = [2, 0], sizes = [1, 16], strides = [1, 1]} : vector<5x16xi32> to vector<1x16xi32>
    %12 = vector.extract_strided_slice %3 {offsets = [3, 0], sizes = [1, 16], strides = [1, 1]} : vector<5x16xi32> to vector<1x16xi32>
    %13 = vector.extract_strided_slice %3 {offsets = [4, 0], sizes = [1, 16], strides = [1, 1]} : vector<5x16xi32> to vector<1x16xi32>
    %14 = vector.broadcast %4 : vector<16x1xi32> to vector<16x16xi32>
    %15 = vector.broadcast %9 : vector<1x16xi32> to vector<16x16xi32>
    %16 = arith.cmpi eq, %14, %15 : vector<16x16xi32>
    %17 = vector.broadcast %5 : vector<16x1xi32> to vector<16x16xi32>
    %18 = vector.broadcast %10 : vector<1x16xi32> to vector<16x16xi32>
    %19 = arith.cmpi eq, %17, %18 : vector<16x16xi32>
    %20 = arith.andi %19, %16 : vector<16x16xi1>
    %21 = vector.broadcast %8 : vector<16x1xi32> to vector<16x16xi32>
    %22 = vector.broadcast %13 : vector<1x16xi32> to vector<16x16xi32>
    %23 = arith.cmpi eq, %21, %22 : vector<16x16xi32>
    %24 = vector.broadcast %5 : vector<16x1xi32> to vector<16x16xi32>
    %25 = vector.broadcast %10 : vector<1x16xi32> to vector<16x16xi32>
    %26 = arith.subi %24, %25 : vector<16x16xi32>
    %c32_i32 = arith.constant 32 : i32
    %27 = vector.broadcast %c32_i32 : i32 to vector<16x16xi32>
    %28 = arith.addi %26, %27 : vector<16x16xi32>
    %c0_i32 = arith.constant 0 : i32
    %c64_i32 = arith.constant 64 : i32
    %29 = vector.broadcast %c0_i32 : i32 to vector<16x16xi32>
    %30 = arith.maxsi %29, %28 : vector<16x16xi32>
    %31 = vector.broadcast %c64_i32 : i32 to vector<16x16xi32>
    %32 = arith.minsi %31, %30 : vector<16x16xi32>
    %c65_i32 = arith.constant 65 : i32
    %33 = vector.broadcast %c65_i32 : i32 to vector<16x16xi32>
    %34 = arith.select %16, %32, %33 : vector<16x16xi1>, vector<16x16xi32>
    %35 = vector.broadcast %6 : vector<16x1xi32> to vector<16x16xi32>
    %36 = vector.broadcast %11 : vector<1x16xi32> to vector<16x16xi32>
    %37 = arith.subi %35, %36 : vector<16x16xi32>
    %c32_i32_5 = arith.constant 32 : i32
    %38 = vector.broadcast %c32_i32_5 : i32 to vector<16x16xi32>
    %39 = arith.addi %37, %38 : vector<16x16xi32>
    %c0_i32_6 = arith.constant 0 : i32
    %c64_i32_7 = arith.constant 64 : i32
    %40 = vector.broadcast %c0_i32_6 : i32 to vector<16x16xi32>
    %41 = arith.maxsi %40, %39 : vector<16x16xi32>
    %42 = vector.broadcast %c64_i32_7 : i32 to vector<16x16xi32>
    %43 = arith.minsi %42, %41 : vector<16x16xi32>
    %c65_i32_8 = arith.constant 65 : i32
    %44 = vector.broadcast %c65_i32_8 : i32 to vector<16x16xi32>
    %45 = arith.select %20, %43, %44 : vector<16x16xi1>, vector<16x16xi32>
    %c66_i32 = arith.constant 66 : i32
    %46 = vector.broadcast %c66_i32 : i32 to vector<16x16xi32>
    %47 = arith.addi %45, %46 : vector<16x16xi32>
    %cst = arith.constant dense<true> : vector<16x16xi1>
    %48 = arith.xori %16, %cst : vector<16x16xi1>
    %49 = vector.broadcast %7 : vector<16x1xi32> to vector<16x16xi32>
    %50 = vector.broadcast %12 : vector<1x16xi32> to vector<16x16xi32>
    %51 = arith.subi %49, %50 : vector<16x16xi32>
    %c2_i32 = arith.constant 2 : i32
    %52 = vector.broadcast %c2_i32 : i32 to vector<16x16xi32>
    %53 = arith.addi %51, %52 : vector<16x16xi32>
    %c0_i32_9 = arith.constant 0 : i32
    %c4_i32 = arith.constant 4 : i32
    %54 = vector.broadcast %c0_i32_9 : i32 to vector<16x16xi32>
    %55 = arith.maxsi %54, %53 : vector<16x16xi32>
    %56 = vector.broadcast %c4_i32 : i32 to vector<16x16xi32>
    %57 = arith.minsi %56, %55 : vector<16x16xi32>
    %c5_i32 = arith.constant 5 : i32
    %58 = vector.broadcast %c5_i32 : i32 to vector<16x16xi32>
    %59 = arith.select %48, %57, %58 : vector<16x16xi1>, vector<16x16xi32>
    %c133_i32 = arith.constant 133 : i32
    %60 = vector.broadcast %c133_i32 : i32 to vector<16x16xi32>
    %61 = arith.addi %59, %60 : vector<16x16xi32>
    %c132_i32 = arith.constant 132 : i32
    %c-1_i32 = arith.constant -1 : i32
    %62 = vector.broadcast %c132_i32 : i32 to vector<16x16xi32>
    %63 = vector.broadcast %c-1_i32 : i32 to vector<16x16xi32>
    %64 = arith.select %23, %62, %63 : vector<16x16xi1>, vector<16x16xi32>
    %65 = tpu.iota {dimensions = array<i32: 2>} : vector<1x1x139xi32>
    %c66_i32_10 = arith.constant 66 : i32
    %66 = vector.broadcast %c66_i32_10 : i32 to vector<1x1x139xi32>
    %67 = arith.cmpi slt, %65, %66 : vector<1x1x139xi32>
    %68 = vector.shape_cast %34 : vector<16x16xi32> to vector<16x16x1xi32>
    %c132_i32_11 = arith.constant 132 : i32
    %69 = vector.broadcast %c132_i32_11 : i32 to vector<1x1x139xi32>
    %70 = arith.cmpi slt, %65, %69 : vector<1x1x139xi32>
    %71 = vector.shape_cast %47 : vector<16x16xi32> to vector<16x16x1xi32>
    %c132_i32_12 = arith.constant 132 : i32
    %72 = vector.broadcast %c132_i32_12 : i32 to vector<1x1x139xi32>
    %73 = arith.cmpi eq, %65, %72 : vector<1x1x139xi32>
    %74 = vector.shape_cast %64 : vector<16x16xi32> to vector<16x16x1xi32>
    %75 = vector.shape_cast %61 : vector<16x16xi32> to vector<16x16x1xi32>
    %76 = vector.shape_cast %73 : vector<1x1x139xi1> to vector<1x1x139xi1>
    %77 = vector.broadcast %76 : vector<1x1x139xi1> to vector<16x16x139xi1>
    %78 = vector.shape_cast %74 : vector<16x16x1xi32> to vector<16x16x1xi32>
    %79 = vector.broadcast %78 : vector<16x16x1xi32> to vector<16x16x139xi32>
    %80 = vector.shape_cast %75 : vector<16x16x1xi32> to vector<16x16x1xi32>
    %81 = vector.broadcast %80 : vector<16x16x1xi32> to vector<16x16x139xi32>
    %82 = arith.select %77, %79, %81 : vector<16x16x139xi1>, vector<16x16x139xi32>
    %83 = vector.shape_cast %70 : vector<1x1x139xi1> to vector<1x1x139xi1>
    %84 = vector.broadcast %83 : vector<1x1x139xi1> to vector<16x16x139xi1>
    %85 = vector.shape_cast %71 : vector<16x16x1xi32> to vector<16x16x1xi32>
    %86 = vector.broadcast %85 : vector<16x16x1xi32> to vector<16x16x139xi32>
    %87 = arith.select %84, %86, %82 : vector<16x16x139xi1>, vector<16x16x139xi32>
    %88 = vector.shape_cast %67 : vector<1x1x139xi1> to vector<1x1x139xi1>
    %89 = vector.broadcast %88 : vector<1x1x139xi1> to vector<16x16x139xi1>
    %90 = vector.shape_cast %68 : vector<16x16x1xi32> to vector<16x16x1xi32>
    %91 = vector.broadcast %90 : vector<16x16x1xi32> to vector<16x16x139xi32>
    %92 = arith.select %89, %91, %87 : vector<16x16x139xi1>, vector<16x16x139xi32>
    %93 = vector.broadcast %65 : vector<1x1x139xi32> to vector<16x16x139xi32>
    %94 = arith.cmpi eq, %92, %93 : vector<16x16x139xi32>
    %95 = arith.extui %94 : vector<16x16x139xi1> to vector<16x16x139xi32>
    %96 = arith.sitofp %95 : vector<16x16x139xi32> to vector<16x16x139xf32>
    %97 = arith.truncf %96 : vector<16x16x139xf32> to vector<16x16x139xbf16>
    %c0_13 = arith.constant 0 : index
    %c0_14 = arith.constant 0 : index
    %c0_15 = arith.constant 0 : index
    %c0_16 = arith.constant 0 : index
    %98 = vector.load %arg5[%c0_13, %c0_14, %c0_15, %c0_16] : memref<1x16x16x139xbf16, #tpu.memory_space<vmem>>, vector<1x16x16x139xbf16>
    %99 = vector.shape_cast %98 : vector<1x16x16x139xbf16> to vector<16x16x139xbf16>
    %100 = vector.shape_cast %97 : vector<16x16x139xbf16> to vector<1x16x16x139xbf16>
    tpu.vector_store %arg5[%c0_13, %c0_14, %c0_15, %c0_16], %100 {strides = array<i32>} : memref<1x16x16x139xbf16, #tpu.memory_space<vmem>>, vector<1x16x16x139xbf16>,
    return
  }
  func.func @transform_0(%arg0: i32, %arg1: i32, %arg2: i32) -> (i32, i32, i32) {
    %c0_i32 = arith.constant 0 : i32
    %c0_i32_0 = arith.constant 0 : i32
    return %arg0, %arg1, %c0_i32 : i32, i32, i32
  }
  func.func @transform_1(%arg0: i32, %arg1: i32, %arg2: i32) -> (i32, i32, i32) {
    %c0_i32 = arith.constant 0 : i32
    %c0_i32_0 = arith.constant 0 : i32
    return %arg0, %c0_i32, %arg2 : i32, i32, i32
  }
  func.func @transform_2(%arg0: i32, %arg1: i32, %arg2: i32) -> (i32, i32, i32, i32) {
    %c0_i32 = arith.constant 0 : i32
    %c0_i32_0 = arith.constant 0 : i32
    return %arg0, %arg1, %arg2, %c0_i32 : i32, i32, i32, i32
  }
}

</mosaic_0001>

<llo_original>
// kernel: tpu_custom_call.1
$region0: #{tpu_custom_call.1}
  #allocation0 [shape = 'u32[]', space=smem, size = 0x4, offset = 0x4, fixed_abs, tag = 'smem constant byte address 0x4 - core index']
  #allocation1 [shape = 'u32[144,128]{1,0:T(1,128)}', space=vmem, size = 0x12000, scoped, tag = 'internal scratch']
  %s0 = inlined_call_operand.vmem [shape: s32[2,16,5], index: 0, kind: input, shape index: {}]
  %s1 = inlined_call_operand.vmem [shape: s32[2,5,16], index: 1, kind: input, shape index: {}]
  %s2 = inlined_call_operand.hbm [shape: bf16[2,16,16,139], index: 2, kind: output, shape index: {}]
  %s3 = sld [smem:[#allocation0]]
  $region41: #{tpu_custom_call.1} parent=0
    _
  %s5 = ssub.s32 1, %s3
  %s6 = scalar_select 0, %s5, %s3
  $region1: #{tpu_custom_call.1} parent=0
    #allocation2 [shape = 'u8[262144]{0}', space=vmem, size = 0x40000, scoped, tag = 'output window, operand 0']
    #allocation3 [shape = 's32[2]{0}', space=sflag, size = 0x8, scoped, tag = 'scoped memory for tpu_custom_call.1']
    %7 = vsyncpa [#allocation3], 0
    %s8 = scalar_lea.sflag [#allocation3], 1
    %9 = vsyncpa %s8, 0
    loop: start=0, step=1, limit=4
    $region2: #{tpu_custom_call.1} parent=1 // loop_pre_header
      _
    $region3: #{tpu_custom_call.1} parent=1 // loop_header
      %s11 = sphi 0, %s15
      %p12 = scmp.ge.s32.totalorder %s11, 4
      %s18 = sphi 0, %s37
      %s19 = sphi 0, %s33
      %s20 = sphi 0, %s29
      %s21 = sphi 0, %s18
      %s22 = sphi 0, %s19
      %s23 = sphi 0, %s20
      %s24 = sphi 0, %s21
      %s25 = sphi 0, %s22
      %s26 = sphi 0, %s23
      %s42 = sphi 0, %s44
      %s45 = sphi 0, %s42
      %s46 = sphi 0, %s45
      %s62 = sphi 0, %s46
      %s70 = sphi 0, %s72
      %s73 = sphi 0, %s70
      %s74 = sphi 0, %s73
      %s90 = sphi 0, %s74
      %s100 = sphi 0, %s102
      %s103 = sphi 0, %s100
      %s104 = sphi 0, %s103
      %s120 = sphi 0, %s104
    $region4: #{tpu_custom_call.1} parent=1 // loop_header_branch
      %14 = sbr.rel (%p12) target = $region8
    $region5: #{tpu_custom_call.1} parent=1 // loop_body
      %s16 = ssub.s32 %s11, 1
      %s17 = ssub.s32 %s11, 2
      %s27 = sadd.s32 1, %s20
      %p28 = scmp.ge.s32.totalorder %s27, 1
      %s29 = scalar_select %p28, 0, %s27
      %s30 = sadd.s32 1, %s19
      %s31 = scalar_select %p28, %s30, %s19
      %p32 = scmp.ge.s32.totalorder %s31, 1
      %s33 = scalar_select %p32, 0, %s31
      %s34 = sadd.s32 1, %s18
      %s35 = scalar_select %p32, %s34, %s18
      %p36 = scmp.ge.s32.totalorder %s35, 2
      %s37 = scalar_select %p36, 0, %s35
      %s38 = ssub.s32 %s18, %s37
      %s39 = ssub.s32 %s19, %s33
      %s40 = sor.u32 %s38, %s39
      %p41 = scmp.eq.s32.totalorder %s40, 0
      %s43 = sadd.s32 %s42, 1
      %s44 = scalar_select %p41, %s42, %s43
      %p47 = pneg %p41
      %p48 = scmp.eq.s32.totalorder %s11, 1
      %p49 = por %p47, %p48
      %p50 = scmp.ne.s32.totalorder %s42, %s45
      %p51 = scmp.eq.s32.totalorder %s11, 0
      %p52 = por %p50, %p51
      %p53 = scmp.ne.s32.totalorder %s42, %s45
      %p54 = scmp.eq.s32.totalorder %s16, 1
      %p55 = por %p53, %p54
      %p56 = scmp.ne.s32.totalorder %s45, %s46
      %p57 = scmp.eq.s32.totalorder %s16, 0
      %p58 = por %p56, %p57
      %p59 = scmp.ne.s32.totalorder %s45, %s46
      %p60 = scmp.eq.s32.totalorder %s17, 1
      %p61 = por %p59, %p60
      %p63 = scmp.ne.s32.totalorder %s46, %s62
      %p64 = scmp.eq.s32.totalorder %s17, 0
      %p65 = por %p63, %p64
      %s66 = ssub.s32 %s18, %s37
      %s67 = ssub.s32 %s20, %s29
      %s68 = sor.u32 %s66, %s67
      %p69 = scmp.eq.s32.totalorder %s68, 0
      %s71 = sadd.s32 %s70, 1
      %s72 = scalar_select %p69, %s70, %s71
      %p75 = pneg %p69
      %p76 = scmp.eq.s32.totalorder %s11, 1
      %p77 = por %p75, %p76
      %p78 = scmp.ne.s32.totalorder %s70, %s73
      %p79 = scmp.eq.s32.totalorder %s11, 0
      %p80 = por %p78, %p79
      %p81 = scmp.ne.s32.totalorder %s70, %s73
      %p82 = scmp.eq.s32.totalorder %s16, 1
      %p83 = por %p81, %p82
      %p84 = scmp.ne.s32.totalorder %s73, %s74
      %p85 = scmp.eq.s32.totalorder %s16, 0
      %p86 = por %p84, %p85
      %p87 = scmp.ne.s32.totalorder %s73, %s74
      %p88 = scmp.eq.s32.totalorder %s17, 1
      %p89 = por %p87, %p88
      %p91 = scmp.ne.s32.totalorder %s74, %s90
      %p92 = scmp.eq.s32.totalorder %s17, 0
      %p93 = por %p91, %p92
      %s94 = ssub.s32 %s18, %s37
      %s95 = ssub.s32 %s19, %s33
      %s96 = sor.u32 %s94, %s95
      %s97 = ssub.s32 %s20, %s29
      %s98 = sor.u32 %s96, %s97
      %p99 = scmp.eq.s32.totalorder %s98, 0
      %s101 = sadd.s32 %s100, 1
      %s102 = scalar_select %p99, %s100, %s101
      %p105 = pneg %p99
      %p106 = scmp.eq.s32.totalorder %s11, 1
      %p107 = por %p105, %p106
      %p108 = scmp.ne.s32.totalorder %s100, %s103
      %p109 = scmp.eq.s32.totalorder %s11, 0
      %p110 = por %p108, %p109
      %p111 = scmp.ne.s32.totalorder %s100, %s103
      %p112 = scmp.eq.s32.totalorder %s16, 1
      %p113 = por %p111, %p112
      %p114 = scmp.ne.s32.totalorder %s103, %s104
      %p115 = scmp.eq.s32.totalorder %s16, 0
      %p116 = por %p114, %p115
      %p117 = scmp.ne.s32.totalorder %s103, %s104
      %p118 = scmp.eq.s32.totalorder %s17, 1
      %p119 = por %p117, %p118
      %p121 = scmp.ne.s32.totalorder %s104, %s120
      %p122 = scmp.eq.s32.totalorder %s17, 0
      %p123 = por %p121, %p122
      %p124 = scmp.le.s32.totalorder 1, %s11
      %p125 = scmp.lt.s32.totalorder %s11, 3
      %p126 = pnand %p124, %p125
      %p127 = pneg %p126
      // Predicated region
      $region9: #{tpu_custom_call.1} parent=5 // pred_check
        _
      $region10: #{tpu_custom_call.1} parent=5 // pred_check_branch
        %129 = sbr.rel (%p126) target = $region12
      $region11: #{tpu_custom_call.1} parent=5 // pred_region
        %s130 = ssub.s32 %s11, 1
      $region12: #{tpu_custom_call.1} parent=5 // pred_fallthru
        _
      %p131 = scmp.lt.s32.totalorder %s11, 2
      // Predicated region
      $region13: #{tpu_custom_call.1} parent=5 // pred_check
        %p132 = pneg %p131
      $region14: #{tpu_custom_call.1} parent=5 // pred_check_branch
        %134 = sbr.rel (%p132) target = $region16
      $region15: #{tpu_custom_call.1} parent=5 // pred_region
        // Predicated region
        $region17: #{tpu_custom_call.1} parent=15 // pred_check
          %p135 = pneg %p52
        $region18: #{tpu_custom_call.1} parent=15 // pred_check_branch
          %137 = sbr.rel (%p135) target = $region20
        $region19: #{tpu_custom_call.1} parent=15 // pred_region
          %s138 = smul.u32 2, %s19
          %p139 = scmp.lt.s32.totalorder %s18, 1
          %s140 = scalar_select %p139, %s18, 1
          %p141 = scmp.lt.s32.totalorder %s138, 1
          %s142 = scalar_select %p141, %s138, 1
          %s143 = smul.addr %s140, 2
          %s144 = sadd.s32 %s142, %s143
          %s145 = smul.addr %s144, 8
          %s146 = scalar_lea.vmem %s0, %s145
          %s147 = smul.u32 2, %s19
        $region20: #{tpu_custom_call.1} parent=15 // pred_fallthru
          _
        // Predicated region
        $region21: #{tpu_custom_call.1} parent=15 // pred_check
          %p148 = pneg %p80
        $region22: #{tpu_custom_call.1} parent=15 // pred_check_branch
          %150 = sbr.rel (%p148) target = $region24
        $region23: #{tpu_custom_call.1} parent=15 // pred_region
          %p151 = scmp.lt.s32.totalorder %s18, 1
          %s152 = scalar_select %p151, %s18, 1
          %p153 = scmp.lt.s32.totalorder %s20, 0
          %s154 = scalar_select %p153, %s20, 0
          %s155 = sadd.s32 %s154, %s152
          %s156 = smul.addr %s155, 8
          %s157 = scalar_lea.vmem %s1, %s156
        $region24: #{tpu_custom_call.1} parent=15 // pred_fallthru
          _
      $region16: #{tpu_custom_call.1} parent=5 // pred_fallthru
        _
      %p158 = scmp.le.s32.totalorder 1, %s11
      %p159 = scmp.lt.s32.totalorder %s11, 3
      %p160 = pnand %p158, %p159
      %p161 = pneg %p160
      // Predicated region
      $region25: #{tpu_custom_call.1} parent=5 // pred_check
        _
      $region26: #{tpu_custom_call.1} parent=5 // pred_check_branch
        %163 = sbr.rel (%p160) target = $region28
      $region27: #{tpu_custom_call.1} parent=5 // pred_region
        %s164 = ssub.s32 %s11, 1
        %s165 = smul.u32 2, %s22
        %p166 = scmp.lt.s32.totalorder %s21, 1
        %s167 = scalar_select %p166, %s21, 1
        %p168 = scmp.lt.s32.totalorder %s165, 1
        %s169 = scalar_select %p168, %s165, 1
        %s170 = smul.addr %s167, 2
        %s171 = sadd.s32 %s169, %s170
        %s172 = smul.addr %s171, 8
        %s173 = scalar_lea.vmem %s0, %s172
        %p174 = pneg %p58
        %p175 = pneg %p55
        %p176 = scmp.lt.s32.totalorder %s21, 1
        %s177 = scalar_select %p176, %s21, 1
        %p178 = scmp.lt.s32.totalorder %s23, 0
        %s179 = scalar_select %p178, %s23, 0
        %s180 = sadd.s32 %s179, %s177
        %s181 = smul.addr %s180, 8
        %s182 = scalar_lea.vmem %s1, %s181
        %p183 = pneg %p86
        %p184 = pneg %p83
        %p185 = pneg %p116
        %p186 = pneg %p113
        %s187 = sand.u32 %s103, 1
        %s188 = scalar_lea.sflag [#allocation3], %s187
        %s189 = sand.u32 %s103, 1
        %s190 = smul.addr %s189, 256
        %s191 = scalar_lea.vmem [#allocation2], %s190
        %s192 = smul.u32 2, %s22
        %p193 = scmp.lt.s32.totalorder %s21, 1
        %s194 = scalar_select %p193, %s21, 1
        %p195 = scmp.lt.s32.totalorder %s192, 1
        %s196 = scalar_select %p195, %s192, 1
        %s197 = smul.addr %s194, 2
        %s198 = sadd.s32 %s196, %s197
        %s199 = smul.addr %s198, 8
        %s200 = scalar_lea.vmem %s0, %s199
        %s201 = smul.u32 2, %s22
        %p202 = scmp.lt.s32.totalorder %s21, 1
        %s203 = scalar_select %p202, %s21, 1
        %p204 = scmp.lt.s32.totalorder %s23, 0
        %s205 = scalar_select %p204, %s23, 0
        %s206 = sadd.s32 %s205, %s203
        %s207 = smul.addr %s206, 8
        %s208 = scalar_lea.vmem %s1, %s207
        %s209 = smul.u32 16, %s22
        %s210 = smul.u32 2, %s23
        %v211 = vld [vmem:[%s200] sm:$0xff]
        %v212 = vld [vmem:[%s200 + $0x8] sm:$0xff]
        %v213 = vld [vmem:[%s208] sm:$0x1f]
        %214 = vset.pattern.permute.xlu0 0
        %215 = vperm.xlu0 %214, %v211
        %v216 = vpop.permute.xlu0 %215
        %217 = vset.pattern.permute.xlu0 0
        %218 = vperm.xlu0 %217, %v212
        %v219 = vpop.permute.xlu0 %218
        %v220 = vlaneseq
        %v221 = vshrl.u32 %v220, 7
        %v222 = vsub.s32 0, %v221
        %v223 = vrot.slane %v213, %v222
        %vm224 = vcmp.eq.s32.totalorder %v216, %v223
        %vm225 = vcmp.eq.s32.totalorder %v219, %v223
        %226 = vset.pattern.permute.xlu0 1
        %227 = vperm.xlu0 %226, %v211
        %v228 = vpop.permute.xlu0 %227
        %229 = vset.pattern.permute.xlu0 1
        %230 = vperm.xlu0 %229, %v212
        %v231 = vpop.permute.xlu0 %230
        %v232 = vlaneseq
        %v233 = vshrl.u32 %v232, 7
        %v234 = vsub.s32 1, %v233
        %v235 = vrot.slane %v213, %v234
        %vm236 = vcmp.eq.s32.totalorder %v228, %v235
        %vm237 = vcmp.eq.s32.totalorder %v231, %v235
        %vm238 = vmand %vm236, %vm224
        %vm239 = vmand %vm237, %vm225
        %240 = vset.pattern.permute.xlu0 4
        %241 = vperm.xlu0 %240, %v211
        %v242 = vpop.permute.xlu0 %241
        %243 = vset.pattern.permute.xlu0 4
        %244 = vperm.xlu0 %243, %v212
        %v245 = vpop.permute.xlu0 %244
        %v246 = vlaneseq
        %v247 = vshrl.u32 %v246, 7
        %v248 = vsub.s32 4, %v247
        %v249 = vrot.slane %v213, %v248
        %vm250 = vcmp.eq.s32.totalorder %v242, %v249
        %vm251 = vcmp.eq.s32.totalorder %v245, %v249
        %v252 = vsub.s32 %v228, %v235
        %v253 = vsub.s32 %v231, %v235
        %v254 = vadd.s32 %v252, 32
        %v255 = vadd.s32 %v253, 32
        %vm256 = vcmp.gt.s32.totalorder %v254, 0
        %v257 = vsel %vm256, %v254, 0
        %vm258 = vcmp.gt.s32.totalorder %v255, 0
        %v259 = vsel %vm258, %v255, 0
        %vm260 = vcmp.lt.s32.totalorder %v257, 64
        %v261 = vsel %vm260, %v257, 64
        %vm262 = vcmp.lt.s32.totalorder %v259, 64
        %v263 = vsel %vm262, %v259, 64
        %v264 = vsel %vm224, %v261, 65
        %v265 = vsel %vm225, %v263, 65
        %266 = vset.pattern.permute.xlu0 2
        %267 = vperm.xlu0 %266, %v211
        %v268 = vpop.permute.xlu0 %267
        %269 = vset.pattern.permute.xlu0 2
        %270 = vperm.xlu0 %269, %v212
        %v271 = vpop.permute.xlu0 %270
        %v272 = vlaneseq
        %v273 = vshrl.u32 %v272, 7
        %v274 = vsub.s32 2, %v273
        %v275 = vrot.slane %v213, %v274
        %v276 = vsub.s32 %v268, %v275
        %v277 = vsub.s32 %v271, %v275
        %v278 = vadd.s32 %v276, 32
        %v279 = vadd.s32 %v277, 32
        %vm280 = vcmp.gt.s32.totalorder %v278, 0
        %v281 = vsel %vm280, %v278, 0
        %vm282 = vcmp.gt.s32.totalorder %v279, 0
        %v283 = vsel %vm282, %v279, 0
        %vm284 = vcmp.lt.s32.totalorder %v281, 64
        %v285 = vsel %vm284, %v281, 64
        %vm286 = vcmp.lt.s32.totalorder %v283, 64
        %v287 = vsel %vm286, %v283, 64
        %v288 = vsel %vm238, %v285, 65
        %v289 = vsel %vm239, %v287, 65
        %v290 = vadd.s32 %v288, 66
        %v291 = vadd.s32 %v289, 66
        %vm292 = vmxor %vm224, 1
        %vm293 = vmxor %vm225, 1
        %294 = vset.pattern.permute.xlu0 3
        %295 = vperm.xlu0 %294, %v211
        %v296 = vpop.permute.xlu0 %295
        %297 = vset.pattern.permute.xlu0 3
        %298 = vperm.xlu0 %297, %v212
        %v299 = vpop.permute.xlu0 %298
        %v300 = vlaneseq
        %v301 = vshrl.u32 %v300, 7
        %v302 = vsub.s32 3, %v301
        %v303 = vrot.slane %v213, %v302
        %v304 = vsub.s32 %v296, %v303
        %v305 = vsub.s32 %v299, %v303
        %v306 = vadd.s32 %v304, 2
        %v307 = vadd.s32 %v305, 2
        %vm308 = vcmp.gt.s32.totalorder %v306, 0
        %v309 = vsel %vm308, %v306, 0
        %vm310 = vcmp.gt.s32.totalorder %v307, 0
        %v311 = vsel %vm310, %v307, 0
        %vm312 = vcmp.lt.s32.totalorder %v309, 4
        %v313 = vsel %vm312, %v309, 4
        %vm314 = vcmp.lt.s32.totalorder %v311, 4
        %v315 = vsel %vm314, %v311, 4
        %v316 = vsel %vm292, %v313, 5
        %v317 = vsel %vm293, %v315, 5
        %v318 = vadd.s32 %v316, 133
        %v319 = vadd.s32 %v317, 133
        %v320 = vsel %vm250, 132, 4294967295
        %v321 = vsel %vm251, 132, 4294967295
        %v322 = vlaneseq
        %v323 = vand.u32 %v322, 127
        %v324 = vadd.s32 %v323, 128
        %vm325 = vcmp.lt.s32.totalorder %v323, 66
        %vm326 = vcmp.lt.s32.totalorder %v324, 66
        %v327 = vlaneseq
        %v328 = vshrl.u32 %v327, 7
        %v329 = vsub.s32 0, %v328
        %v330 = vrot.slane %v264, %v329
        %332 = vbcast.lane.b32.xlu0 %v330, 256
        %v333 = vpop.permute.xlu0 %332
        %s335 = sor.u32 256, 8
        %336 = vbcast.lane.b32.xlu0 %v330, %s335
        %v337 = vpop.permute.xlu0 %336
        %v338 = vlaneseq
        %v339 = vshrl.u32 %v338, 7
        %v340 = vsub.s32 1, %v339
        %v341 = vrot.slane %v264, %v340
        %343 = vbcast.lane.b32.xlu0 %v341, 256
        %v344 = vpop.permute.xlu0 %343
        %s346 = sor.u32 256, 8
        %347 = vbcast.lane.b32.xlu0 %v341, %s346
        %v348 = vpop.permute.xlu0 %347
        %v349 = vlaneseq
        %v350 = vshrl.u32 %v349, 7
        %v351 = vsub.s32 2, %v350
        %v352 = vrot.slane %v264, %v351
        %354 = vbcast.lane.b32.xlu0 %v352, 256
        %v355 = vpop.permute.xlu0 %354
        %s357 = sor.u32 256, 8
        %358 = vbcast.lane.b32.xlu0 %v352, %s357
        %v359 = vpop.permute.xlu0 %358
        %v360 = vlaneseq
        %v361 = vshrl.u32 %v360, 7
        %v362 = vsub.s32 3, %v361
        %v363 = vrot.slane %v264, %v362
        %365 = vbcast.lane.b32.xlu0 %v363, 256
        %v366 = vpop.permute.xlu0 %365
        %s368 = sor.u32 256, 8
        %369 = vbcast.lane.b32.xlu0 %v363, %s368
        %v370 = vpop.permute.xlu0 %369
        %v371 = vlaneseq
        %v372 = vshrl.u32 %v371, 7
        %v373 = vsub.s32 4, %v372
        %v374 = vrot.slane %v264, %v373
        %376 = vbcast.lane.b32.xlu0 %v374, 256
        %v377 = vpop.permute.xlu0 %376
        %s379 = sor.u32 256, 8
        %380 = vbcast.lane.b32.xlu0 %v374, %s379
        %v381 = vpop.permute.xlu0 %380
        %v382 = vlaneseq
        %v383 = vshrl.u32 %v382, 7
        %v384 = vsub.s32 5, %v383
        %v385 = vrot.slane %v264, %v384
        %387 = vbcast.lane.b32.xlu0 %v385, 256
        %v388 = vpop.permute.xlu0 %387
        %s390 = sor.u32 256, 8
        %391 = vbcast.lane.b32.xlu0 %v385, %s390
        %v392 = vpop.permute.xlu0 %391
        %v393 = vlaneseq
        %v394 = vshrl.u32 %v393, 7
        %v395 = vsub.s32 6, %v394
        %v396 = vrot.slane %v264, %v395
        %398 = vbcast.lane.b32.xlu0 %v396, 256
        %v399 = vpop.permute.xlu0 %398
        %s401 = sor.u32 256, 8
        %402 = vbcast.lane.b32.xlu0 %v396, %s401
        %v403 = vpop.permute.xlu0 %402
        %v404 = vlaneseq
        %v405 = vshrl.u32 %v404, 7
        %v406 = vsub.s32 7, %v405
        %v407 = vrot.slane %v264, %v406
        %409 = vbcast.lane.b32.xlu0 %v407, 256
        %v410 = vpop.permute.xlu0 %409
        %s412 = sor.u32 256, 8
        %413 = vbcast.lane.b32.xlu0 %v407, %s412
        %v414 = vpop.permute.xlu0 %413
        %v415 = vlaneseq
        %v416 = vshrl.u32 %v415, 7
        %v417 = vsub.s32 0, %v416
        %v418 = vrot.slane %v265, %v417
        %420 = vbcast.lane.b32.xlu0 %v418, 256
        %v421 = vpop.permute.xlu0 %420
        %s423 = sor.u32 256, 8
        %424 = vbcast.lane.b32.xlu0 %v418, %s423
        %v425 = vpop.permute.xlu0 %424
        %v426 = vlaneseq
        %v427 = vshrl.u32 %v426, 7
        %v428 = vsub.s32 1, %v427
        %v429 = vrot.slane %v265, %v428
        %431 = vbcast.lane.b32.xlu0 %v429, 256
        %v432 = vpop.permute.xlu0 %431
        %s434 = sor.u32 256, 8
        %435 = vbcast.lane.b32.xlu0 %v429, %s434
        %v436 = vpop.permute.xlu0 %435
        %v437 = vlaneseq
        %v438 = vshrl.u32 %v437, 7
        %v439 = vsub.s32 2, %v438
        %v440 = vrot.slane %v265, %v439
        %442 = vbcast.lane.b32.xlu0 %v440, 256
        %v443 = vpop.permute.xlu0 %442
        %s445 = sor.u32 256, 8
        %446 = vbcast.lane.b32.xlu0 %v440, %s445
        %v447 = vpop.permute.xlu0 %446
        %v448 = vlaneseq
        %v449 = vshrl.u32 %v448, 7
        %v450 = vsub.s32 3, %v449
        %v451 = vrot.slane %v265, %v450
        %453 = vbcast.lane.b32.xlu0 %v451, 256
        %v454 = vpop.permute.xlu0 %453
        %s456 = sor.u32 256, 8
        %457 = vbcast.lane.b32.xlu0 %v451, %s456
        %v458 = vpop.permute.xlu0 %457
        %v459 = vlaneseq
        %v460 = vshrl.u32 %v459, 7
        %v461 = vsub.s32 4, %v460
        %v462 = vrot.slane %v265, %v461
        %464 = vbcast.lane.b32.xlu0 %v462, 256
        %v465 = vpop.permute.xlu0 %464
        %s467 = sor.u32 256, 8
        %468 = vbcast.lane.b32.xlu0 %v462, %s467
        %v469 = vpop.permute.xlu0 %468
        %v470 = vlaneseq
        %v471 = vshrl.u32 %v470, 7
        %v472 = vsub.s32 5, %v471
        %v473 = vrot.slane %v265, %v472
        %475 = vbcast.lane.b32.xlu0 %v473, 256
        %v476 = vpop.permute.xlu0 %475
        %s478 = sor.u32 256, 8
        %479 = vbcast.lane.b32.xlu0 %v473, %s478
        %v480 = vpop.permute.xlu0 %479
        %v481 = vlaneseq
        %v482 = vshrl.u32 %v481, 7
        %v483 = vsub.s32 6, %v482
        %v484 = vrot.slane %v265, %v483
        %486 = vbcast.lane.b32.xlu0 %v484, 256
        %v487 = vpop.permute.xlu0 %486
        %s489 = sor.u32 256, 8
        %490 = vbcast.lane.b32.xlu0 %v484, %s489
        %v491 = vpop.permute.xlu0 %490
        %v492 = vlaneseq
        %v493 = vshrl.u32 %v492, 7
        %v494 = vsub.s32 7, %v493
        %v495 = vrot.slane %v265, %v494
        %497 = vbcast.lane.b32.xlu0 %v495, 256
        %v498 = vpop.permute.xlu0 %497
        %s500 = sor.u32 256, 8
        %501 = vbcast.lane.b32.xlu0 %v495, %s500
        %v502 = vpop.permute.xlu0 %501
        %vm503 = vcmp.lt.s32.totalorder %v323, 132
        %vm504 = vcmp.lt.s32.totalorder %v324, 132
        %v505 = vlaneseq
        %v506 = vshrl.u32 %v505, 7
        %v507 = vsub.s32 0, %v506
        %v508 = vrot.slane %v290, %v507
        %510 = vbcast.lane.b32.xlu0 %v508, 256
        %v511 = vpop.permute.xlu0 %510
        %s513 = sor.u32 256, 8
        %514 = vbcast.lane.b32.xlu0 %v508, %s513
        %v515 = vpop.permute.xlu0 %514
        %v516 = vlaneseq
        %v517 = vshrl.u32 %v516, 7
        %v518 = vsub.s32 1, %v517
        %v519 = vrot.slane %v290, %v518
        %521 = vbcast.lane.b32.xlu0 %v519, 256
        %v522 = vpop.permute.xlu0 %521
        %s524 = sor.u32 256, 8
        %525 = vbcast.lane.b32.xlu0 %v519, %s524
        %v526 = vpop.permute.xlu0 %525
        %v527 = vlaneseq
        %v528 = vshrl.u32 %v527, 7
        %v529 = vsub.s32 2, %v528
        %v530 = vrot.slane %v290, %v529
        %532 = vbcast.lane.b32.xlu0 %v530, 256
        %v533 = vpop.permute.xlu0 %532
        %s535 = sor.u32 256, 8
        %536 = vbcast.lane.b32.xlu0 %v530, %s535
        %v537 = vpop.permute.xlu0 %536
        %v538 = vlaneseq
        %v539 = vshrl.u32 %v538, 7
        %v540 = vsub.s32 3, %v539
        %v541 = vrot.slane %v290, %v540
        %543 = vbcast.lane.b32.xlu0 %v541, 256
        %v544 = vpop.permute.xlu0 %543
        %s546 = sor.u32 256, 8
        %547 = vbcast.lane.b32.xlu0 %v541, %s546
        %v548 = vpop.permute.xlu0 %547
        %v549 = vlaneseq
        %v550 = vshrl.u32 %v549, 7
        %v551 = vsub.s32 4, %v550
        %v552 = vrot.slane %v290, %v551
        %554 = vbcast.lane.b32.xlu0 %v552, 256
        %v555 = vpop.permute.xlu0 %554
        %s557 = sor.u32 256, 8
        %558 = vbcast.lane.b32.xlu0 %v552, %s557
        %v559 = vpop.permute.xlu0 %558
        %v560 = vlaneseq
        %v561 = vshrl.u32 %v560, 7
        %v562 = vsub.s32 5, %v561
        %v563 = vrot.slane %v290, %v562
        %565 = vbcast.lane.b32.xlu0 %v563, 256
        %v566 = vpop.permute.xlu0 %565
        %s568 = sor.u32 256, 8
        %569 = vbcast.lane.b32.xlu0 %v563, %s568
        %v570 = vpop.permute.xlu0 %569
        %v571 = vlaneseq
        %v572 = vshrl.u32 %v571, 7
        %v573 = vsub.s32 6, %v572
        %v574 = vrot.slane %v290, %v573
        %576 = vbcast.lane.b32.xlu0 %v574, 256
        %v577 = vpop.permute.xlu0 %576
        %s579 = sor.u32 256, 8
        %580 = vbcast.lane.b32.xlu0 %v574, %s579
        %v581 = vpop.permute.xlu0 %580
        %v582 = vlaneseq
        %v583 = vshrl.u32 %v582, 7
        %v584 = vsub.s32 7, %v583
        %v585 = vrot.slane %v290, %v584
        %587 = vbcast.lane.b32.xlu0 %v585, 256
        %v588 = vpop.permute.xlu0 %587
        %s590 = sor.u32 256, 8
        %591 = vbcast.lane.b32.xlu0 %v585, %s590
        %v592 = vpop.permute.xlu0 %591
        %v593 = vlaneseq
        %v594 = vshrl.u32 %v593, 7
        %v595 = vsub.s32 0, %v594
        %v596 = vrot.slane %v291, %v595
        %598 = vbcast.lane.b32.xlu0 %v596, 256
        %v599 = vpop.permute.xlu0 %598
        %s601 = sor.u32 256, 8
        %602 = vbcast.lane.b32.xlu0 %v596, %s601
        %v603 = vpop.permute.xlu0 %602
        %v604 = vlaneseq
        %v605 = vshrl.u32 %v604, 7
        %v606 = vsub.s32 1, %v605
        %v607 = vrot.slane %v291, %v606
        %609 = vbcast.lane.b32.xlu0 %v607, 256
        %v610 = vpop.permute.xlu0 %609
        %s612 = sor.u32 256, 8
        %613 = vbcast.lane.b32.xlu0 %v607, %s612
        %v614 = vpop.permute.xlu0 %613
        %v615 = vlaneseq
        %v616 = vshrl.u32 %v615, 7
        %v617 = vsub.s32 2, %v616
        %v618 = vrot.slane %v291, %v617
        %620 = vbcast.lane.b32.xlu0 %v618, 256
        %v621 = vpop.permute.xlu0 %620
        %s623 = sor.u32 256, 8
        %624 = vbcast.lane.b32.xlu0 %v618, %s623
        %v625 = vpop.permute.xlu0 %624
        %v626 = vlaneseq
        %v627 = vshrl.u32 %v626, 7
        %v628 = vsub.s32 3, %v627
        %v629 = vrot.slane %v291, %v628
        %631 = vbcast.lane.b32.xlu0 %v629, 256
        %v632 = vpop.permute.xlu0 %631
        %s634 = sor.u32 256, 8
        %635 = vbcast.lane.b32.xlu0 %v629, %s634
        %v636 = vpop.permute.xlu0 %635
        %v637 = vlaneseq
        %v638 = vshrl.u32 %v637, 7
        %v639 = vsub.s32 4, %v638
        %v640 = vrot.slane %v291, %v639
        %642 = vbcast.lane.b32.xlu0 %v640, 256
        %v643 = vpop.permute.xlu0 %642
        %s645 = sor.u32 256, 8
        %646 = vbcast.lane.b32.xlu0 %v640, %s645
        %v647 = vpop.permute.xlu0 %646
        %v648 = vlaneseq
        %v649 = vshrl.u32 %v648, 7
        %v650 = vsub.s32 5, %v649
        %v651 = vrot.slane %v291, %v650
        %653 = vbcast.lane.b32.xlu0 %v651, 256
        %v654 = vpop.permute.xlu0 %653
        %s656 = sor.u32 256, 8
        %657 = vbcast.lane.b32.xlu0 %v651, %s656
        %v658 = vpop.permute.xlu0 %657
        %v659 = vlaneseq
        %v660 = vshrl.u32 %v659, 7
        %v661 = vsub.s32 6, %v660
        %v662 = vrot.slane %v291, %v661
        %664 = vbcast.lane.b32.xlu0 %v662, 256
        %v665 = vpop.permute.xlu0 %664
        %s667 = sor.u32 256, 8
        %668 = vbcast.lane.b32.xlu0 %v662, %s667
        %v669 = vpop.permute.xlu0 %668
        %v670 = vlaneseq
        %v671 = vshrl.u32 %v670, 7
        %v672 = vsub.s32 7, %v671
        %v673 = vrot.slane %v291, %v672
        %675 = vbcast.lane.b32.xlu0 %v673, 256
        %v676 = vpop.permute.xlu0 %675
        %s678 = sor.u32 256, 8
        %679 = vbcast.lane.b32.xlu0 %v673, %s678
        %v680 = vpop.permute.xlu0 %679
        %vm681 = vcmp.eq.s32.totalorder %v323, 132
        %vm682 = vcmp.eq.s32.totalorder %v324, 132
        %v683 = vlaneseq
        %v684 = vshrl.u32 %v683, 7
        %v685 = vsub.s32 0, %v684
        %v686 = vrot.slane %v320, %v685
        %688 = vbcast.lane.b32.xlu0 %v686, 256
        %v689 = vpop.permute.xlu0 %688
        %s691 = sor.u32 256, 8
        %692 = vbcast.lane.b32.xlu0 %v686, %s691
        %v693 = vpop.permute.xlu0 %692
        %v694 = vlaneseq
        %v695 = vshrl.u32 %v694, 7
        %v696 = vsub.s32 1, %v695
        %v697 = vrot.slane %v320, %v696
        %699 = vbcast.lane.b32.xlu0 %v697, 256
        %v700 = vpop.permute.xlu0 %699
        %s702 = sor.u32 256, 8
        %703 = vbcast.lane.b32.xlu0 %v697, %s702
        %v704 = vpop.permute.xlu0 %703
        %v705 = vlaneseq
        %v706 = vshrl.u32 %v705, 7
        %v707 = vsub.s32 2, %v706
        %v708 = vrot.slane %v320, %v707
        %710 = vbcast.lane.b32.xlu0 %v708, 256
        %v711 = vpop.permute.xlu0 %710
        %s713 = sor.u32 256, 8
        %714 = vbcast.lane.b32.xlu0 %v708, %s713
        %v715 = vpop.permute.xlu0 %714
        %v716 = vlaneseq
        %v717 = vshrl.u32 %v716, 7
        %v718 = vsub.s32 3, %v717
        %v719 = vrot.slane %v320, %v718
        %721 = vbcast.lane.b32.xlu0 %v719, 256
        %v722 = vpop.permute.xlu0 %721
        %s724 = sor.u32 256, 8
        %725 = vbcast.lane.b32.xlu0 %v719, %s724
        %v726 = vpop.permute.xlu0 %725
        %v727 = vlaneseq
        %v728 = vshrl.u32 %v727, 7
        %v729 = vsub.s32 4, %v728
        %v730 = vrot.slane %v320, %v729
        %732 = vbcast.lane.b32.xlu0 %v730, 256
        %v733 = vpop.permute.xlu0 %732
        %s735 = sor.u32 256, 8
        %736 = vbcast.lane.b32.xlu0 %v730, %s735
        %v737 = vpop.permute.xlu0 %736
        %v738 = vlaneseq
        %v739 = vshrl.u32 %v738, 7
        %v740 = vsub.s32 5, %v739
        %v741 = vrot.slane %v320, %v740
        %743 = vbcast.lane.b32.xlu0 %v741, 256
        %v744 = vpop.permute.xlu0 %743
        %s746 = sor.u32 256, 8
        %747 = vbcast.lane.b32.xlu0 %v741, %s746
        %v748 = vpop.permute.xlu0 %747
        %v749 = vlaneseq
        %v750 = vshrl.u32 %v749, 7
        %v751 = vsub.s32 6, %v750
        %v752 = vrot.slane %v320, %v751
        %754 = vbcast.lane.b32.xlu0 %v752, 256
        %v755 = vpop.permute.xlu0 %754
        %s757 = sor.u32 256, 8
        %758 = vbcast.lane.b32.xlu0 %v752, %s757
        %v759 = vpop.permute.xlu0 %758
        %v760 = vlaneseq
        %v761 = vshrl.u32 %v760, 7
        %v762 = vsub.s32 7, %v761
        %v763 = vrot.slane %v320, %v762
        %765 = vbcast.lane.b32.xlu0 %v763, 256
        %v766 = vpop.permute.xlu0 %765
        %s768 = sor.u32 256, 8
        %769 = vbcast.lane.b32.xlu0 %v763, %s768
        %v770 = vpop.permute.xlu0 %769
        %v771 = vlaneseq
        %v772 = vshrl.u32 %v771, 7
        %v773 = vsub.s32 0, %v772
        %v774 = vrot.slane %v321, %v773
        %776 = vbcast.lane.b32.xlu0 %v774, 256
        %v777 = vpop.permute.xlu0 %776
        %s779 = sor.u32 256, 8
        %780 = vbcast.lane.b32.xlu0 %v774, %s779
        %v781 = vpop.permute.xlu0 %780
        %v782 = vlaneseq
        %v783 = vshrl.u32 %v782, 7
        %v784 = vsub.s32 1, %v783
        %v785 = vrot.slane %v321, %v784
        %787 = vbcast.lane.b32.xlu0 %v785, 256
        %v788 = vpop.permute.xlu0 %787
        %s790 = sor.u32 256, 8
        %791 = vbcast.lane.b32.xlu0 %v785, %s790
        %v792 = vpop.permute.xlu0 %791
        %v793 = vlaneseq
        %v794 = vshrl.u32 %v793, 7
        %v795 = vsub.s32 2, %v794
        %v796 = vrot.slane %v321, %v795
        %798 = vbcast.lane.b32.xlu0 %v796, 256
        %v799 = vpop.permute.xlu0 %798
        %s801 = sor.u32 256, 8
        %802 = vbcast.lane.b32.xlu0 %v796, %s801
        %v803 = vpop.permute.xlu0 %802
        %v804 = vlaneseq
        %v805 = vshrl.u32 %v804, 7
        %v806 = vsub.s32 3, %v805
        %v807 = vrot.slane %v321, %v806
        %809 = vbcast.lane.b32.xlu0 %v807, 256
        %v810 = vpop.permute.xlu0 %809
        %s812 = sor.u32 256, 8
        %813 = vbcast.lane.b32.xlu0 %v807, %s812
        %v814 = vpop.permute.xlu0 %813
        %v815 = vlaneseq
        %v816 = vshrl.u32 %v815, 7
        %v817 = vsub.s32 4, %v816
        %v818 = vrot.slane %v321, %v817
        %820 = vbcast.lane.b32.xlu0 %v818, 256
        %v821 = vpop.permute.xlu0 %820
        %s823 = sor.u32 256, 8
        %824 = vbcast.lane.b32.xlu0 %v818, %s823
        %v825 = vpop.permute.xlu0 %824
        %v826 = vlaneseq
        %v827 = vshrl.u32 %v826, 7
        %v828 = vsub.s32 5, %v827
        %v829 = vrot.slane %v321, %v828
        %831 = vbcast.lane.b32.xlu0 %v829, 256
        %v832 = vpop.permute.xlu0 %831
        %s834 = sor.u32 256, 8
        %835 = vbcast.lane.b32.xlu0 %v829, %s834
        %v836 = vpop.permute.xlu0 %835
        %v837 = vlaneseq
        %v838 = vshrl.u32 %v837, 7
        %v839 = vsub.s32 6, %v838
        %v840 = vrot.slane %v321, %v839
        %842 = vbcast.lane.b32.xlu0 %v840, 256
        %v843 = vpop.permute.xlu0 %842
        %s845 = sor.u32 256, 8
        %846 = vbcast.lane.b32.xlu0 %v840, %s845
        %v847 = vpop.permute.xlu0 %846
        %v848 = vlaneseq
        %v849 = vshrl.u32 %v848, 7
        %v850 = vsub.s32 7, %v849
        %v851 = vrot.slane %v321, %v850
        %853 = vbcast.lane.b32.xlu0 %v851, 256
        %v854 = vpop.permute.xlu0 %853
        %s856 = sor.u32 256, 8
        %857 = vbcast.lane.b32.xlu0 %v851, %s856
        %v858 = vpop.permute.xlu0 %857
        %v859 = vlaneseq
        %v860 = vshrl.u32 %v859, 7
        %v861 = vsub.s32 0, %v860
        %v862 = vrot.slane %v318, %v861
        %864 = vbcast.lane.b32.xlu0 %v862, 256
        %v865 = vpop.permute.xlu0 %864
        %s867 = sor.u32 256, 8
        %868 = vbcast.lane.b32.xlu0 %v862, %s867
        %v869 = vpop.permute.xlu0 %868
        %v870 = vlaneseq
        %v871 = vshrl.u32 %v870, 7
        %v872 = vsub.s32 1, %v871
        %v873 = vrot.slane %v318, %v872
        %875 = vbcast.lane.b32.xlu0 %v873, 256
        %v876 = vpop.permute.xlu0 %875
        %s878 = sor.u32 256, 8
        %879 = vbcast.lane.b32.xlu0 %v873, %s878
        %v880 = vpop.permute.xlu0 %879
        %v881 = vlaneseq
        %v882 = vshrl.u32 %v881, 7
        %v883 = vsub.s32 2, %v882
        %v884 = vrot.slane %v318, %v883
        %886 = vbcast.lane.b32.xlu0 %v884, 256
        %v887 = vpop.permute.xlu0 %886
        %s889 = sor.u32 256, 8
        %890 = vbcast.lane.b32.xlu0 %v884, %s889
        %v891 = vpop.permute.xlu0 %890
        %v892 = vlaneseq
        %v893 = vshrl.u32 %v892, 7
        %v894 = vsub.s32 3, %v893
        %v895 = vrot.slane %v318, %v894
        %897 = vbcast.lane.b32.xlu0 %v895, 256
        %v898 = vpop.permute.xlu0 %897
        %s900 = sor.u32 256, 8
        %901 = vbcast.lane.b32.xlu0 %v895, %s900
        %v902 = vpop.permute.xlu0 %901
        %v903 = vlaneseq
        %v904 = vshrl.u32 %v903, 7
        %v905 = vsub.s32 4, %v904
        %v906 = vrot.slane %v318, %v905
        %908 = vbcast.lane.b32.xlu0 %v906, 256
        %v909 = vpop.permute.xlu0 %908
        %s911 = sor.u32 256, 8
        %912 = vbcast.lane.b32.xlu0 %v906, %s911
        %v913 = vpop.permute.xlu0 %912
        %v914 = vlaneseq
        %v915 = vshrl.u32 %v914, 7
        %v916 = vsub.s32 5, %v915
        %v917 = vrot.slane %v318, %v916
        %919 = vbcast.lane.b32.xlu0 %v917, 256
        %v920 = vpop.permute.xlu0 %919
        %s922 = sor.u32 256, 8
        %923 = vbcast.lane.b32.xlu0 %v917, %s922
        %v924 = vpop.permute.xlu0 %923
        %v925 = vlaneseq
        %v926 = vshrl.u32 %v925, 7
        %v927 = vsub.s32 6, %v926
        %v928 = vrot.slane %v318, %v927
        %930 = vbcast.lane.b32.xlu0 %v928, 256
        %v931 = vpop.permute.xlu0 %930
        %s933 = sor.u32 256, 8
        %934 = vbcast.lane.b32.xlu0 %v928, %s933
        %v935 = vpop.permute.xlu0 %934
        %v936 = vlaneseq
        %v937 = vshrl.u32 %v936, 7
        %v938 = vsub.s32 7, %v937
        %v939 = vrot.slane %v318, %v938
        %941 = vbcast.lane.b32.xlu0 %v939, 256
        %v942 = vpop.permute.xlu0 %941
        %s944 = sor.u32 256, 8
        %945 = vbcast.lane.b32.xlu0 %v939, %s944
        %v946 = vpop.permute.xlu0 %945
        %v947 = vlaneseq
        %v948 = vshrl.u32 %v947, 7
        %v949 = vsub.s32 0, %v948
        %v950 = vrot.slane %v319, %v949
        %952 = vbcast.lane.b32.xlu0 %v950, 256
        %v953 = vpop.permute.xlu0 %952
        %s955 = sor.u32 256, 8
        %956 = vbcast.lane.b32.xlu0 %v950, %s955
        %v957 = vpop.permute.xlu0 %956
        %v958 = vlaneseq
        %v959 = vshrl.u32 %v958, 7
        %v960 = vsub.s32 1, %v959
        %v961 = vrot.slane %v319, %v960
        %963 = vbcast.lane.b32.xlu0 %v961, 256
        %v964 = vpop.permute.xlu0 %963
        %s966 = sor.u32 256, 8
        %967 = vbcast.lane.b32.xlu0 %v961, %s966
        %v968 = vpop.permute.xlu0 %967
        %v969 = vlaneseq
        %v970 = vshrl.u32 %v969, 7
        %v971 = vsub.s32 2, %v970
        %v972 = vrot.slane %v319, %v971
        %974 = vbcast.lane.b32.xlu0 %v972, 256
        %v975 = vpop.permute.xlu0 %974
        %s977 = sor.u32 256, 8
        %978 = vbcast.lane.b32.xlu0 %v972, %s977
        %v979 = vpop.permute.xlu0 %978
        %v980 = vlaneseq
        %v981 = vshrl.u32 %v980, 7
        %v982 = vsub.s32 3, %v981
        %v983 = vrot.slane %v319, %v982
        %985 = vbcast.lane.b32.xlu0 %v983, 256
        %v986 = vpop.permute.xlu0 %985
        %s988 = sor.u32 256, 8
        %989 = vbcast.lane.b32.xlu0 %v983, %s988
        %v990 = vpop.permute.xlu0 %989
        %v991 = vlaneseq
        %v992 = vshrl.u32 %v991, 7
        %v993 = vsub.s32 4, %v992
        %v994 = vrot.slane %v319, %v993
        %996 = vbcast.lane.b32.xlu0 %v994, 256
        %v997 = vpop.permute.xlu0 %996
        %s999 = sor.u32 256, 8
        %1000 = vbcast.lane.b32.xlu0 %v994, %s999
        %v1001 = vpop.permute.xlu0 %1000
        %v1002 = vlaneseq
        %v1003 = vshrl.u32 %v1002, 7
        %v1004 = vsub.s32 5, %v1003
        %v1005 = vrot.slane %v319, %v1004
        %1007 = vbcast.lane.b32.xlu0 %v1005, 256
        %v1008 = vpop.permute.xlu0 %1007
        %s1010 = sor.u32 256, 8
        %1011 = vbcast.lane.b32.xlu0 %v1005, %s1010
        %v1012 = vpop.permute.xlu0 %1011
        %v1013 = vlaneseq
        %v1014 = vshrl.u32 %v1013, 7
        %v1015 = vsub.s32 6, %v1014
        %v1016 = vrot.slane %v319, %v1015
        %1018 = vbcast.lane.b32.xlu0 %v1016, 256
        %v1019 = vpop.permute.xlu0 %1018
        %s1021 = sor.u32 256, 8
        %1022 = vbcast.lane.b32.xlu0 %v1016, %s1021
        %v1023 = vpop.permute.xlu0 %1022
        %v1024 = vlaneseq
        %v1025 = vshrl.u32 %v1024, 7
        %v1026 = vsub.s32 7, %v1025
        %v1027 = vrot.slane %v319, %v1026
        %1029 = vbcast.lane.b32.xlu0 %v1027, 256
        %v1030 = vpop.permute.xlu0 %1029
        %s1032 = sor.u32 256, 8
        %1033 = vbcast.lane.b32.xlu0 %v1027, %s1032
        %v1034 = vpop.permute.xlu0 %1033
        %v1035 = vsel %vm681, 1, 0
        %v1036 = vsel %vm682, 1, 0
        %vm1037 = vcmp.eq.s32.totalorder %v1035, 1
        %vm1038 = vcmp.eq.s32.totalorder %v1036, 1
        %v1039 = vsel %vm1037, %v689, %v865
        %v1040 = vsel %vm1038, %v689, %v865
        %v1041 = vsel %vm1037, %v693, %v869
        %v1042 = vsel %vm1038, %v693, %v869
        %v1043 = vsel %vm1037, %v700, %v876
        %v1044 = vsel %vm1038, %v700, %v876
        %v1045 = vsel %vm1037, %v704, %v880
        %v1046 = vsel %vm1038, %v704, %v880
        %v1047 = vsel %vm1037, %v711, %v887
        %v1048 = vsel %vm1038, %v711, %v887
        %v1049 = vsel %vm1037, %v715, %v891
        %v1050 = vsel %vm1038, %v715, %v891
        %v1051 = vsel %vm1037, %v722, %v898
        %v1052 = vsel %vm1038, %v722, %v898
        %v1053 = vsel %vm1037, %v726, %v902
        %v1054 = vsel %vm1038, %v726, %v902
        %v1055 = vsel %vm1037, %v733, %v909
        %v1056 = vsel %vm1038, %v733, %v909
        %v1057 = vsel %vm1037, %v737, %v913
        %v1058 = vsel %vm1038, %v737, %v913
        %v1059 = vsel %vm1037, %v744, %v920
        %v1060 = vsel %vm1038, %v744, %v920
        %v1061 = vsel %vm1037, %v748, %v924
        %v1062 = vsel %vm1038, %v748, %v924
        %v1063 = vsel %vm1037, %v755, %v931
        %v1064 = vsel %vm1038, %v755, %v931
        %v1065 = vsel %vm1037, %v759, %v935
        %v1066 = vsel %vm1038, %v759, %v935
        %v1067 = vsel %vm1037, %v766, %v942
        %v1068 = vsel %vm1038, %v766, %v942
        %v1069 = vsel %vm1037, %v770, %v946
        %v1070 = vsel %vm1038, %v770, %v946
        %v1071 = vsel %vm1037, %v777, %v953
        %v1072 = vsel %vm1038, %v777, %v953
        %v1073 = vsel %vm1037, %v781, %v957
        %v1074 = vsel %vm1038, %v781, %v957
        %v1075 = vsel %vm1037, %v788, %v964
        %v1076 = vsel %vm1038, %v788, %v964
        %v1077 = vsel %vm1037, %v792, %v968
        %v1078 = vsel %vm1038, %v792, %v968
        %v1079 = vsel %vm1037, %v799, %v975
        %v1080 = vsel %vm1038, %v799, %v975
        %v1081 = vsel %vm1037, %v803, %v979
        %v1082 = vsel %vm1038, %v803, %v979
        %v1083 = vsel %vm1037, %v810, %v986
        %v1084 = vsel %vm1038, %v810, %v986
        %v1085 = vsel %vm1037, %v814, %v990
        %v1086 = vsel %vm1038, %v814, %v990
        %v1087 = vsel %vm1037, %v821, %v997
        %v1088 = vsel %vm1038, %v821, %v997
        %v1089 = vsel %vm1037, %v825, %v1001
        %v1090 = vsel %vm1038, %v825, %v1001
        %v1091 = vsel %vm1037, %v832, %v1008
        %v1092 = vsel %vm1038, %v832, %v1008
        %v1093 = vsel %vm1037, %v836, %v1012
        %v1094 = vsel %vm1038, %v836, %v1012
        %v1095 = vsel %vm1037, %v843, %v1019
        %v1096 = vsel %vm1038, %v843, %v1019
        %v1097 = vsel %vm1037, %v847, %v1023
        %v1098 = vsel %vm1038, %v847, %v1023
        %v1099 = vsel %vm1037, %v854, %v1030
        %v1100 = vsel %vm1038, %v854, %v1030
        %v1101 = vsel %vm1037, %v858, %v1034
        %v1102 = vsel %vm1038, %v858, %v1034
        %v1103 = vsel %vm503, 1, 0
        %v1104 = vsel %vm504, 1, 0
        %vm1105 = vcmp.eq.s32.totalorder %v1103, 1
        %vm1106 = vcmp.eq.s32.totalorder %v1104, 1
        %v1107 = vsel %vm1105, %v511, %v1039
        %v1108 = vsel %vm1106, %v511, %v1040
        %v1109 = vsel %vm1105, %v515, %v1041
        %v1110 = vsel %vm1106, %v515, %v1042
        %v1111 = vsel %vm1105, %v522, %v1043
        %v1112 = vsel %vm1106, %v522, %v1044
        %v1113 = vsel %vm1105, %v526, %v1045
        %v1114 = vsel %vm1106, %v526, %v1046
        %v1115 = vsel %vm1105, %v533, %v1047
        %v1116 = vsel %vm1106, %v533, %v1048
        %v1117 = vsel %vm1105, %v537, %v1049
        %v1118 = vsel %vm1106, %v537, %v1050
        %v1119 = vsel %vm1105, %v544, %v1051
        %v1120 = vsel %vm1106, %v544, %v1052
        %v1121 = vsel %vm1105, %v548, %v1053
        %v1122 = vsel %vm1106, %v548, %v1054
        %v1123 = vsel %vm1105, %v555, %v1055
        %v1124 = vsel %vm1106, %v555, %v1056
        %v1125 = vsel %vm1105, %v559, %v1057
        %v1126 = vsel %vm1106, %v559, %v1058
        %v1127 = vsel %vm1105, %v566, %v1059
        %v1128 = vsel %vm1106, %v566, %v1060
        %v1129 = vsel %vm1105, %v570, %v1061
        %v1130 = vsel %vm1106, %v570, %v1062
        %v1131 = vsel %vm1105, %v577, %v1063
        %v1132 = vsel %vm1106, %v577, %v1064
        %v1133 = vsel %vm1105, %v581, %v1065
        %v1134 = vsel %vm1106, %v581, %v1066
        %v1135 = vsel %vm1105, %v588, %v1067
        %v1136 = vsel %vm1106, %v588, %v1068
        %v1137 = vsel %vm1105, %v592, %v1069
        %v1138 = vsel %vm1106, %v592, %v1070
        %v1139 = vsel %vm1105, %v599, %v1071
        %v1140 = vsel %vm1106, %v599, %v1072
        %v1141 = vsel %vm1105, %v603, %v1073
        %v1142 = vsel %vm1106, %v603, %v1074
        %v1143 = vsel %vm1105, %v610, %v1075
        %v1144 = vsel %vm1106, %v610, %v1076
        %v1145 = vsel %vm1105, %v614, %v1077
        %v1146 = vsel %vm1106, %v614, %v1078
        %v1147 = vsel %vm1105, %v621, %v1079
        %v1148 = vsel %vm1106, %v621, %v1080
        %v1149 = vsel %vm1105, %v625, %v1081
        %v1150 = vsel %vm1106, %v625, %v1082
        %v1151 = vsel %vm1105, %v632, %v1083
        %v1152 = vsel %vm1106, %v632, %v1084
        %v1153 = vsel %vm1105, %v636, %v1085
        %v1154 = vsel %vm1106, %v636, %v1086
        %v1155 = vsel %vm1105, %v643, %v1087
        %v1156 = vsel %vm1106, %v643, %v1088
        %v1157 = vsel %vm1105, %v647, %v1089
        %v1158 = vsel %vm1106, %v647, %v1090
        %v1159 = vsel %vm1105, %v654, %v1091
        %v1160 = vsel %vm1106, %v654, %v1092
        %v1161 = vsel %vm1105, %v658, %v1093
        %v1162 = vsel %vm1106, %v658, %v1094
        %v1163 = vsel %vm1105, %v665, %v1095
        %v1164 = vsel %vm1106, %v665, %v1096
        %v1165 = vsel %vm1105, %v669, %v1097
        %v1166 = vsel %vm1106, %v669, %v1098
        %v1167 = vsel %vm1105, %v676, %v1099
        %v1168 = vsel %vm1106, %v676, %v1100
        %v1169 = vsel %vm1105, %v680, %v1101
        %v1170 = vsel %vm1106, %v680, %v1102
        %v1171 = vsel %vm325, 1, 0
        %v1172 = vsel %vm326, 1, 0
        %vm1173 = vcmp.eq.s32.totalorder %v1171, 1
        %vm1174 = vcmp.eq.s32.totalorder %v1172, 1
        %v1175 = vsel %vm1173, %v333, %v1107
        %v1176 = vsel %vm1174, %v333, %v1108
        %v1177 = vsel %vm1173, %v337, %v1109
        %v1178 = vsel %vm1174, %v337, %v1110
        %v1179 = vsel %vm1173, %v344, %v1111
        %v1180 = vsel %vm1174, %v344, %v1112
        %v1181 = vsel %vm1173, %v348, %v1113
        %v1182 = vsel %vm1174, %v348, %v1114
        %v1183 = vsel %vm1173, %v355, %v1115
        %v1184 = vsel %vm1174, %v355, %v1116
        %v1185 = vsel %vm1173, %v359, %v1117
        %v1186 = vsel %vm1174, %v359, %v1118
        %v1187 = vsel %vm1173, %v366, %v1119
        %v1188 = vsel %vm1174, %v366, %v1120
        %v1189 = vsel %vm1173, %v370, %v1121
        %v1190 = vsel %vm1174, %v370, %v1122
        %v1191 = vsel %vm1173, %v377, %v1123
        %v1192 = vsel %vm1174, %v377, %v1124
        %v1193 = vsel %vm1173, %v381, %v1125
        %v1194 = vsel %vm1174, %v381, %v1126
        %v1195 = vsel %vm1173, %v388, %v1127
        %v1196 = vsel %vm1174, %v388, %v1128
        %v1197 = vsel %vm1173, %v392, %v1129
        %v1198 = vsel %vm1174, %v392, %v1130
        %v1199 = vsel %vm1173, %v399, %v1131
        %v1200 = vsel %vm1174, %v399, %v1132
        %v1201 = vsel %vm1173, %v403, %v1133
        %v1202 = vsel %vm1174, %v403, %v1134
        %v1203 = vsel %vm1173, %v410, %v1135
        %v1204 = vsel %vm1174, %v410, %v1136
        %v1205 = vsel %vm1173, %v414, %v1137
        %v1206 = vsel %vm1174, %v414, %v1138
        %v1207 = vsel %vm1173, %v421, %v1139
        %v1208 = vsel %vm1174, %v421, %v1140
        %v1209 = vsel %vm1173, %v425, %v1141
        %v1210 = vsel %vm1174, %v425, %v1142
        %v1211 = vsel %vm1173, %v432, %v1143
        %v1212 = vsel %vm1174, %v432, %v1144
        %v1213 = vsel %vm1173, %v436, %v1145
        %v1214 = vsel %vm1174, %v436, %v1146
        %v1215 = vsel %vm1173, %v443, %v1147
        %v1216 = vsel %vm1174, %v443, %v1148
        %v1217 = vsel %vm1173, %v447, %v1149
        %v1218 = vsel %vm1174, %v447, %v1150
        %v1219 = vsel %vm1173, %v454, %v1151
        %v1220 = vsel %vm1174, %v454, %v1152
        %v1221 = vsel %vm1173, %v458, %v1153
        %v1222 = vsel %vm1174, %v458, %v1154
        %v1223 = vsel %vm1173, %v465, %v1155
        %v1224 = vsel %vm1174, %v465, %v1156
        %v1225 = vsel %vm1173, %v469, %v1157
        %v1226 = vsel %vm1174, %v469, %v1158
        %v1227 = vsel %vm1173, %v476, %v1159
        %v1228 = vsel %vm1174, %v476, %v1160
        %v1229 = vsel %vm1173, %v480, %v1161
        %v1230 = vsel %vm1174, %v480, %v1162
        %v1231 = vsel %vm1173, %v487, %v1163
        %v1232 = vsel %vm1174, %v487, %v1164
        %v1233 = vsel %vm1173, %v491, %v1165
        %v1234 = vsel %vm1174, %v491, %v1166
        %v1235 = vsel %vm1173, %v498, %v1167
        %v1236 = vsel %vm1174, %v498, %v1168
        %v1237 = vsel %vm1173, %v502, %v1169
        %v1238 = vsel %vm1174, %v502, %v1170
        %vm1239 = vcmp.eq.s32.totalorder %v1175, %v323
        %vm1240 = vcmp.eq.s32.totalorder %v1176, %v324
        %vm1241 = vcmp.eq.s32.totalorder %v1177, %v323
        %vm1242 = vcmp.eq.s32.totalorder %v1178, %v324
        %vm1243 = vcmp.eq.s32.totalorder %v1179, %v323
        %vm1244 = vcmp.eq.s32.totalorder %v1180, %v324
        %vm1245 = vcmp.eq.s32.totalorder %v1181, %v323
        %vm1246 = vcmp.eq.s32.totalorder %v1182, %v324
        %vm1247 = vcmp.eq.s32.totalorder %v1183, %v323
        %vm1248 = vcmp.eq.s32.totalorder %v1184, %v324
        %vm1249 = vcmp.eq.s32.totalorder %v1185, %v323
        %vm1250 = vcmp.eq.s32.totalorder %v1186, %v324
        %vm1251 = vcmp.eq.s32.totalorder %v1187, %v323
        %vm1252 = vcmp.eq.s32.totalorder %v1188, %v324
        %vm1253 = vcmp.eq.s32.totalorder %v1189, %v323
        %vm1254 = vcmp.eq.s32.totalorder %v1190, %v324
        %vm1255 = vcmp.eq.s32.totalorder %v1191, %v323
        %vm1256 = vcmp.eq.s32.totalorder %v1192, %v324
        %vm1257 = vcmp.eq.s32.totalorder %v1193, %v323
        %vm1258 = vcmp.eq.s32.totalorder %v1194, %v324
        %vm1259 = vcmp.eq.s32.totalorder %v1195, %v323
        %vm1260 = vcmp.eq.s32.totalorder %v1196, %v324
        %vm1261 = vcmp.eq.s32.totalorder %v1197, %v323
        %vm1262 = vcmp.eq.s32.totalorder %v1198, %v324
        %vm1263 = vcmp.eq.s32.totalorder %v1199, %v323
        %vm1264 = vcmp.eq.s32.totalorder %v1200, %v324
        %vm1265 = vcmp.eq.s32.totalorder %v1201, %v323
        %vm1266 = vcmp.eq.s32.totalorder %v1202, %v324
        %vm1267 = vcmp.eq.s32.totalorder %v1203, %v323
        %vm1268 = vcmp.eq.s32.totalorder %v1204, %v324
        %vm1269 = vcmp.eq.s32.totalorder %v1205, %v323
        %vm1270 = vcmp.eq.s32.totalorder %v1206, %v324
        %vm1271 = vcmp.eq.s32.totalorder %v1207, %v323
        %vm1272 = vcmp.eq.s32.totalorder %v1208, %v324
        %vm1273 = vcmp.eq.s32.totalorder %v1209, %v323
        %vm1274 = vcmp.eq.s32.totalorder %v1210, %v324
        %vm1275 = vcmp.eq.s32.totalorder %v1211, %v323
        %vm1276 = vcmp.eq.s32.totalorder %v1212, %v324
        %vm1277 = vcmp.eq.s32.totalorder %v1213, %v323
        %vm1278 = vcmp.eq.s32.totalorder %v1214, %v324
        %vm1279 = vcmp.eq.s32.totalorder %v1215, %v323
        %vm1280 = vcmp.eq.s32.totalorder %v1216, %v324
        %vm1281 = vcmp.eq.s32.totalorder %v1217, %v323
        %vm1282 = vcmp.eq.s32.totalorder %v1218, %v324
        %vm1283 = vcmp.eq.s32.totalorder %v1219, %v323
        %vm1284 = vcmp.eq.s32.totalorder %v1220, %v324
        %vm1285 = vcmp.eq.s32.totalorder %v1221, %v323
        %vm1286 = vcmp.eq.s32.totalorder %v1222, %v324
        %vm1287 = vcmp.eq.s32.totalorder %v1223, %v323
        %vm1288 = vcmp.eq.s32.totalorder %v1224, %v324
        %vm1289 = vcmp.eq.s32.totalorder %v1225, %v323
        %vm1290 = vcmp.eq.s32.totalorder %v1226, %v324
        %vm1291 = vcmp.eq.s32.totalorder %v1227, %v323
        %vm1292 = vcmp.eq.s32.totalorder %v1228, %v324
        %vm1293 = vcmp.eq.s32.totalorder %v1229, %v323
        %vm1294 = vcmp.eq.s32.totalorder %v1230, %v324
        %vm1295 = vcmp.eq.s32.totalorder %v1231, %v323
        %vm1296 = vcmp.eq.s32.totalorder %v1232, %v324
        %vm1297 = vcmp.eq.s32.totalorder %v1233, %v323
        %vm1298 = vcmp.eq.s32.totalorder %v1234, %v324
        %vm1299 = vcmp.eq.s32.totalorder %v1235, %v323
        %vm1300 = vcmp.eq.s32.totalorder %v1236, %v324
        %vm1301 = vcmp.eq.s32.totalorder %v1237, %v323
        %vm1302 = vcmp.eq.s32.totalorder %v1238, %v324
        %v1303 = vsel %vm1239, 1, 0
        %v1304 = vsel %vm1240, 1, 0
        %v1305 = vsel %vm1241, 1, 0
        %v1306 = vsel %vm1242, 1, 0
        %v1307 = vsel %vm1243, 1, 0
        %v1308 = vsel %vm1244, 1, 0
        %v1309 = vsel %vm1245, 1, 0
        %v1310 = vsel %vm1246, 1, 0
        %v1311 = vsel %vm1247, 1, 0
        %v1312 = vsel %vm1248, 1, 0
        %v1313 = vsel %vm1249, 1, 0
        %v1314 = vsel %vm1250, 1, 0
        %v1315 = vsel %vm1251, 1, 0
        %v1316 = vsel %vm1252, 1, 0
        %v1317 = vsel %vm1253, 1, 0
        %v1318 = vsel %vm1254, 1, 0
        %v1319 = vsel %vm1255, 1, 0
        %v1320 = vsel %vm1256, 1, 0
        %v1321 = vsel %vm1257, 1, 0
        %v1322 = vsel %vm1258, 1, 0
        %v1323 = vsel %vm1259, 1, 0
        %v1324 = vsel %vm1260, 1, 0
        %v1325 = vsel %vm1261, 1, 0
        %v1326 = vsel %vm1262, 1, 0
        %v1327 = vsel %vm1263, 1, 0
        %v1328 = vsel %vm1264, 1, 0
        %v1329 = vsel %vm1265, 1, 0
        %v1330 = vsel %vm1266, 1, 0
        %v1331 = vsel %vm1267, 1, 0
        %v1332 = vsel %vm1268, 1, 0
        %v1333 = vsel %vm1269, 1, 0
        %v1334 = vsel %vm1270, 1, 0
        %v1335 = vsel %vm1271, 1, 0
        %v1336 = vsel %vm1272, 1, 0
        %v1337 = vsel %vm1273, 1, 0
        %v1338 = vsel %vm1274, 1, 0
        %v1339 = vsel %vm1275, 1, 0
        %v1340 = vsel %vm1276, 1, 0
        %v1341 = vsel %vm1277, 1, 0
        %v1342 = vsel %vm1278, 1, 0
        %v1343 = vsel %vm1279, 1, 0
        %v1344 = vsel %vm1280, 1, 0
        %v1345 = vsel %vm1281, 1, 0
        %v1346 = vsel %vm1282, 1, 0
        %v1347 = vsel %vm1283, 1, 0
        %v1348 = vsel %vm1284, 1, 0
        %v1349 = vsel %vm1285, 1, 0
        %v1350 = vsel %vm1286, 1, 0
        %v1351 = vsel %vm1287, 1, 0
        %v1352 = vsel %vm1288, 1, 0
        %v1353 = vsel %vm1289, 1, 0
        %v1354 = vsel %vm1290, 1, 0
        %v1355 = vsel %vm1291, 1, 0
        %v1356 = vsel %vm1292, 1, 0
        %v1357 = vsel %vm1293, 1, 0
        %v1358 = vsel %vm1294, 1, 0
        %v1359 = vsel %vm1295, 1, 0
        %v1360 = vsel %vm1296, 1, 0
        %v1361 = vsel %vm1297, 1, 0
        %v1362 = vsel %vm1298, 1, 0
        %v1363 = vsel %vm1299, 1, 0
        %v1364 = vsel %vm1300, 1, 0
        %v1365 = vsel %vm1301, 1, 0
        %v1366 = vsel %vm1302, 1, 0
        %v1367 = vcvt.s32.f32 %v1303
        %v1368 = vcvt.s32.f32 %v1304
        %v1369 = vcvt.s32.f32 %v1305
        %v1370 = vcvt.s32.f32 %v1306
        %v1371 = vcvt.s32.f32 %v1307
        %v1372 = vcvt.s32.f32 %v1308
        %v1373 = vcvt.s32.f32 %v1309
        %v1374 = vcvt.s32.f32 %v1310
        %v1375 = vcvt.s32.f32 %v1311
        %v1376 = vcvt.s32.f32 %v1312
        %v1377 = vcvt.s32.f32 %v1313
        %v1378 = vcvt.s32.f32 %v1314
        %v1379 = vcvt.s32.f32 %v1315
        %v1380 = vcvt.s32.f32 %v1316
        %v1381 = vcvt.s32.f32 %v1317
        %v1382 = vcvt.s32.f32 %v1318
        %v1383 = vcvt.s32.f32 %v1319
        %v1384 = vcvt.s32.f32 %v1320
        %v1385 = vcvt.s32.f32 %v1321
        %v1386 = vcvt.s32.f32 %v1322
        %v1387 = vcvt.s32.f32 %v1323
        %v1388 = vcvt.s32.f32 %v1324
        %v1389 = vcvt.s32.f32 %v1325
        %v1390 = vcvt.s32.f32 %v1326
        %v1391 = vcvt.s32.f32 %v1327
        %v1392 = vcvt.s32.f32 %v1328
        %v1393 = vcvt.s32.f32 %v1329
        %v1394 = vcvt.s32.f32 %v1330
        %v1395 = vcvt.s32.f32 %v1331
        %v1396 = vcvt.s32.f32 %v1332
        %v1397 = vcvt.s32.f32 %v1333
        %v1398 = vcvt.s32.f32 %v1334
        %v1399 = vcvt.s32.f32 %v1335
        %v1400 = vcvt.s32.f32 %v1336
        %v1401 = vcvt.s32.f32 %v1337
        %v1402 = vcvt.s32.f32 %v1338
        %v1403 = vcvt.s32.f32 %v1339
        %v1404 = vcvt.s32.f32 %v1340
        %v1405 = vcvt.s32.f32 %v1341
        %v1406 = vcvt.s32.f32 %v1342
        %v1407 = vcvt.s32.f32 %v1343
        %v1408 = vcvt.s32.f32 %v1344
        %v1409 = vcvt.s32.f32 %v1345
        %v1410 = vcvt.s32.f32 %v1346
        %v1411 = vcvt.s32.f32 %v1347
        %v1412 = vcvt.s32.f32 %v1348
        %v1413 = vcvt.s32.f32 %v1349
        %v1414 = vcvt.s32.f32 %v1350
        %v1415 = vcvt.s32.f32 %v1351
        %v1416 = vcvt.s32.f32 %v1352
        %v1417 = vcvt.s32.f32 %v1353
        %v1418 = vcvt.s32.f32 %v1354
        %v1419 = vcvt.s32.f32 %v1355
        %v1420 = vcvt.s32.f32 %v1356
        %v1421 = vcvt.s32.f32 %v1357
        %v1422 = vcvt.s32.f32 %v1358
        %v1423 = vcvt.s32.f32 %v1359
        %v1424 = vcvt.s32.f32 %v1360
        %v1425 = vcvt.s32.f32 %v1361
        %v1426 = vcvt.s32.f32 %v1362
        %v1427 = vcvt.s32.f32 %v1363
        %v1428 = vcvt.s32.f32 %v1364
        %v1429 = vcvt.s32.f32 %v1365
        %v1430 = vcvt.s32.f32 %v1366
        %v1431 = vpack.c.bf16 %v1369, %v1367
        %v1432 = vpack.c.bf16 %v1370, %v1368
        %v1433 = vpack.c.bf16 %v1373, %v1371
        %v1434 = vpack.c.bf16 %v1374, %v1372
        %v1435 = vpack.c.bf16 %v1377, %v1375
        %v1436 = vpack.c.bf16 %v1378, %v1376
        %v1437 = vpack.c.bf16 %v1381, %v1379
        %v1438 = vpack.c.bf16 %v1382, %v1380
        %v1439 = vpack.c.bf16 %v1385, %v1383
        %v1440 = vpack.c.bf16 %v1386, %v1384
        %v1441 = vpack.c.bf16 %v1389, %v1387
        %v1442 = vpack.c.bf16 %v1390, %v1388
        %v1443 = vpack.c.bf16 %v1393, %v1391
        %v1444 = vpack.c.bf16 %v1394, %v1392
        %v1445 = vpack.c.bf16 %v1397, %v1395
        %v1446 = vpack.c.bf16 %v1398, %v1396
        %v1447 = vpack.c.bf16 %v1401, %v1399
        %v1448 = vpack.c.bf16 %v1402, %v1400
        %v1449 = vpack.c.bf16 %v1405, %v1403
        %v1450 = vpack.c.bf16 %v1406, %v1404
        %v1451 = vpack.c.bf16 %v1409, %v1407
        %v1452 = vpack.c.bf16 %v1410, %v1408
        %v1453 = vpack.c.bf16 %v1413, %v1411
        %v1454 = vpack.c.bf16 %v1414, %v1412
        %v1455 = vpack.c.bf16 %v1417, %v1415
        %v1456 = vpack.c.bf16 %v1418, %v1416
        %v1457 = vpack.c.bf16 %v1421, %v1419
        %v1458 = vpack.c.bf16 %v1422, %v1420
        %v1459 = vpack.c.bf16 %v1425, %v1423
        %v1460 = vpack.c.bf16 %v1426, %v1424
        %v1461 = vpack.c.bf16 %v1429, %v1427
        %v1462 = vpack.c.bf16 %v1430, %v1428
        %v1495 = vunpack.c.l.b16 %v1431
        %v1496 = vunpack.c.l.b16 %v1432
        %v1497 = vunpack.c.h.b16 %v1431
        %v1498 = vunpack.c.h.b16 %v1432
        %v1499 = vunpack.c.l.b16 %v1433
        %v1500 = vunpack.c.l.b16 %v1434
        %v1501 = vunpack.c.h.b16 %v1433
        %v1502 = vunpack.c.h.b16 %v1434
        %v1503 = vunpack.c.l.b16 %v1435
        %v1504 = vunpack.c.l.b16 %v1436
        %v1505 = vunpack.c.h.b16 %v1435
        %v1506 = vunpack.c.h.b16 %v1436
        %v1507 = vunpack.c.l.b16 %v1437
        %v1508 = vunpack.c.l.b16 %v1438
        %v1509 = vunpack.c.h.b16 %v1437
        %v1510 = vunpack.c.h.b16 %v1438
        %v1511 = vunpack.c.l.b16 %v1439
        %v1512 = vunpack.c.l.b16 %v1440
        %v1513 = vunpack.c.h.b16 %v1439
        %v1514 = vunpack.c.h.b16 %v1440
        %v1515 = vunpack.c.l.b16 %v1441
        %v1516 = vunpack.c.l.b16 %v1442
        %v1517 = vunpack.c.h.b16 %v1441
        %v1518 = vunpack.c.h.b16 %v1442
        %v1519 = vunpack.c.l.b16 %v1443
        %v1520 = vunpack.c.l.b16 %v1444
        %v1521 = vunpack.c.h.b16 %v1443
        %v1522 = vunpack.c.h.b16 %v1444
        %v1523 = vunpack.c.l.b16 %v1445
        %v1524 = vunpack.c.l.b16 %v1446
        %v1525 = vunpack.c.h.b16 %v1445
        %v1526 = vunpack.c.h.b16 %v1446
        %v1527 = vunpack.c.l.b16 %v1447
        %v1528 = vunpack.c.l.b16 %v1448
        %v1529 = vunpack.c.h.b16 %v1447
        %v1530 = vunpack.c.h.b16 %v1448
        %v1531 = vunpack.c.l.b16 %v1449
        %v1532 = vunpack.c.l.b16 %v1450
        %v1533 = vunpack.c.h.b16 %v1449
        %v1534 = vunpack.c.h.b16 %v1450
        %v1535 = vunpack.c.l.b16 %v1451
        %v1536 = vunpack.c.l.b16 %v1452
        %v1537 = vunpack.c.h.b16 %v1451
        %v1538 = vunpack.c.h.b16 %v1452
        %v1539 = vunpack.c.l.b16 %v1453
        %v1540 = vunpack.c.l.b16 %v1454
        %v1541 = vunpack.c.h.b16 %v1453
        %v1542 = vunpack.c.h.b16 %v1454
        %v1543 = vunpack.c.l.b16 %v1455
        %v1544 = vunpack.c.l.b16 %v1456
        %v1545 = vunpack.c.h.b16 %v1455
        %v1546 = vunpack.c.h.b16 %v1456
        %v1547 = vunpack.c.l.b16 %v1457
        %v1548 = vunpack.c.l.b16 %v1458
        %v1549 = vunpack.c.h.b16 %v1457
        %v1550 = vunpack.c.h.b16 %v1458
        %v1551 = vunpack.c.l.b16 %v1459
        %v1552 = vunpack.c.l.b16 %v1460
        %v1553 = vunpack.c.h.b16 %v1459
        %v1554 = vunpack.c.h.b16 %v1460
        %v1555 = vunpack.c.l.b16 %v1461
        %v1556 = vunpack.c.l.b16 %v1462
        %v1557 = vunpack.c.h.b16 %v1461
        %v1558 = vunpack.c.h.b16 %v1462
        %v1559 = vpack.c.b16 %v1496, %v1495
        %v1560 = vpack.c.b16 %v1498, %v1497
        %v1561 = vpack.c.b16 %v1500, %v1499
        %v1562 = vpack.c.b16 %v1502, %v1501
        %v1563 = vpack.c.b16 %v1504, %v1503
        %v1564 = vpack.c.b16 %v1506, %v1505
        %v1565 = vpack.c.b16 %v1508, %v1507
        %v1566 = vpack.c.b16 %v1510, %v1509
        %v1567 = vpack.c.b16 %v1512, %v1511
        %v1568 = vpack.c.b16 %v1514, %v1513
        %v1569 = vpack.c.b16 %v1516, %v1515
        %v1570 = vpack.c.b16 %v1518, %v1517
        %v1571 = vpack.c.b16 %v1520, %v1519
        %v1572 = vpack.c.b16 %v1522, %v1521
        %v1573 = vpack.c.b16 %v1524, %v1523
        %v1574 = vpack.c.b16 %v1526, %v1525
        %v1575 = vpack.c.b16 %v1528, %v1527
        %v1576 = vpack.c.b16 %v1530, %v1529
        %v1577 = vpack.c.b16 %v1532, %v1531
        %v1578 = vpack.c.b16 %v1534, %v1533
        %v1579 = vpack.c.b16 %v1536, %v1535
        %v1580 = vpack.c.b16 %v1538, %v1537
        %v1581 = vpack.c.b16 %v1540, %v1539
        %v1582 = vpack.c.b16 %v1542, %v1541
        %v1583 = vpack.c.b16 %v1544, %v1543
        %v1584 = vpack.c.b16 %v1546, %v1545
        %v1585 = vpack.c.b16 %v1548, %v1547
        %v1586 = vpack.c.b16 %v1550, %v1549
        %v1587 = vpack.c.b16 %v1552, %v1551
        %v1588 = vpack.c.b16 %v1554, %v1553
        %v1589 = vpack.c.b16 %v1556, %v1555
        %v1590 = vpack.c.b16 %v1558, %v1557
        %vm1623 = vcmask 1043456
        %vm1624 = vcmask 89092
        %vm1625 = vmor %vm1624, %vm1623
        %1626 = vst.msk [vmem:[%s191] sm:$0xff] %vm1625, %v1559
        %1627 = vst.msk [vmem:[%s191 + $0x8] sm:$0xff] %vm1625, %v1560
        %1628 = vst.msk [vmem:[%s191 + $0x10] sm:$0xff] %vm1625, %v1561
        %1629 = vst.msk [vmem:[%s191 + $0x18] sm:$0xff] %vm1625, %v1562
        %1630 = vst.msk [vmem:[%s191 + $0x20] sm:$0xff] %vm1625, %v1563
        %1631 = vst.msk [vmem:[%s191 + $0x28] sm:$0xff] %vm1625, %v1564
        %1632 = vst.msk [vmem:[%s191 + $0x30] sm:$0xff] %vm1625, %v1565
        %1633 = vst.msk [vmem:[%s191 + $0x38] sm:$0xff] %vm1625, %v1566
        %1634 = vst.msk [vmem:[%s191 + $0x40] sm:$0xff] %vm1625, %v1567
        %1635 = vst.msk [vmem:[%s191 + $0x48] sm:$0xff] %vm1625, %v1568
        %1636 = vst.msk [vmem:[%s191 + $0x50] sm:$0xff] %vm1625, %v1569
        %1637 = vst.msk [vmem:[%s191 + $0x58] sm:$0xff] %vm1625, %v1570
        %1638 = vst.msk [vmem:[%s191 + $0x60] sm:$0xff] %vm1625, %v1571
        %1639 = vst.msk [vmem:[%s191 + $0x68] sm:$0xff] %vm1625, %v1572
        %1640 = vst.msk [vmem:[%s191 + $0x70] sm:$0xff] %vm1625, %v1573
        %1641 = vst.msk [vmem:[%s191 + $0x78] sm:$0xff] %vm1625, %v1574
        %1642 = vst.msk [vmem:[%s191 + $0x80] sm:$0xff] %vm1625, %v1575
        %1643 = vst.msk [vmem:[%s191 + $0x88] sm:$0xff] %vm1625, %v1576
        %1644 = vst.msk [vmem:[%s191 + $0x90] sm:$0xff] %vm1625, %v1577
        %1645 = vst.msk [vmem:[%s191 + $0x98] sm:$0xff] %vm1625, %v1578
        %1646 = vst.msk [vmem:[%s191 + $0xa0] sm:$0xff] %vm1625, %v1579
        %1647 = vst.msk [vmem:[%s191 + $0xa8] sm:$0xff] %vm1625, %v1580
        %1648 = vst.msk [vmem:[%s191 + $0xb0] sm:$0xff] %vm1625, %v1581
        %1649 = vst.msk [vmem:[%s191 + $0xb8] sm:$0xff] %vm1625, %v1582
        %1650 = vst.msk [vmem:[%s191 + $0xc0] sm:$0xff] %vm1625, %v1583
        %1651 = vst.msk [vmem:[%s191 + $0xc8] sm:$0xff] %vm1625, %v1584
        %1652 = vst.msk [vmem:[%s191 + $0xd0] sm:$0xff] %vm1625, %v1585
        %1653 = vst.msk [vmem:[%s191 + $0xd8] sm:$0xff] %vm1625, %v1586
        %1654 = vst.msk [vmem:[%s191 + $0xe0] sm:$0xff] %vm1625, %v1587
        %1655 = vst.msk [vmem:[%s191 + $0xe8] sm:$0xff] %vm1625, %v1588
        %1656 = vst.msk [vmem:[%s191 + $0xf0] sm:$0xff] %vm1625, %v1589
        %1657 = vst.msk [vmem:[%s191 + $0xf8] sm:$0xff] %vm1625, %v1590
        %s1658 = sand.u32 %s103, 1
        %s1659 = scalar_lea.sflag [#allocation3], %s1658
        %s1660 = sand.u32 %s103, 1
        %s1661 = smul.addr %s1660, 256
        %s1662 = scalar_lea.vmem [#allocation2], %s1661
        // Predicated region
        $region29: #{tpu_custom_call.1} parent=27 // pred_check
          %p1663 = pneg %p113
        $region30: #{tpu_custom_call.1} parent=27 // pred_check_branch
          %1665 = sbr.rel (%p1663) target = $region32
        $region31: #{tpu_custom_call.1} parent=27 // pred_region
          %s1666 = smul.u32 16, %s22
          %s1667 = smul.u32 2, %s23
          %s1669 = ssub.s32 4096, 4096
          %1670 = vsyncadd %s1659, %s1669
          %s1671 = smul.addr %s1667, 2
          %s1672 = smul.addr %s1666, 4
          %s1673 = sadd.s32 %s1671, %s1672
          %s1674 = smul.addr %s21, 64
          %s1675 = sadd.s32 %s1673, %s1674
          %s1676 = smul.addr %s1675, 64
          %s1677 = scalar_lea.hbm %s2, %s1676
          %s1678 = sshll.u32 %s1662, 4
          %s1679 = int_to_ptr.vmem [resolvable:$true] %s1678
          %1684 = dma.vmem_to_hbm [thread:$0]  %s1679, 4096, %s1677, %s1659, 128, 128, 8
        $region32: #{tpu_custom_call.1} parent=27 // pred_fallthru
          _
      $region28: #{tpu_custom_call.1} parent=5 // pred_fallthru
        _
      %p1685 = scmp.le.s32.totalorder 2, %s11
      // Predicated region
      $region33: #{tpu_custom_call.1} parent=5 // pred_check
        %p1686 = pneg %p1685
      $region34: #{tpu_custom_call.1} parent=5 // pred_check_branch
        %1688 = sbr.rel (%p1686) target = $region36
      $region35: #{tpu_custom_call.1} parent=5 // pred_region
        %s1689 = ssub.s32 %s11, 2
        // Predicated region
        $region37: #{tpu_custom_call.1} parent=35 // pred_check
          %p1690 = pneg %p119
        $region38: #{tpu_custom_call.1} parent=35 // pred_check_branch
          %1692 = sbr.rel (%p1690) target = $region40
        $region39: #{tpu_custom_call.1} parent=35 // pred_region
          %s1693 = sand.u32 %s104, 1
          %s1694 = scalar_lea.sflag [#allocation3], %s1693
          %s1695 = sand.u32 %s104, 1
          %s1696 = smul.addr %s1695, 256
          %s1697 = scalar_lea.vmem [#allocation2], %s1696
          %1698 = dma.done %s1694, 4096
        $region40: #{tpu_custom_call.1} parent=35 // pred_fallthru
          _
      $region36: #{tpu_custom_call.1} parent=5 // pred_fallthru
        _
    $region6: #{tpu_custom_call.1} parent=1 // loop_footer
      %s15 = sadd.s32 1, %s11
    $region7: #{tpu_custom_call.1} parent=1 // loop_footer_branch
      %10 = sbr.rel target = $region3
    $region8: #{tpu_custom_call.1} parent=1 // loop_exit
      _
    %1699 = vsyncpa [#allocation3], 1
    %s1700 = scalar_lea.sflag [#allocation3], 1
    %1701 = vsyncpa %s1700, 1

</llo_original>
